<compile_context>
chip_gen: v7x
topology: tpu7x:2x2x1
jax: 0.10.0
libtpu: 0.0.40
codegen_flags: <defaults>
</compile_context>

<pallas_src>
import jax
import jax.numpy as jnp
from jax.experimental import pallas as pl
from jax.experimental.pallas import tpu as pltpu

NUM_FEATURES = 512
NUM_LABELVEC = 300
NUM_LATENT = 512
NUM_RELATIONS = 71
IN_DIM = NUM_FEATURES + 2 * NUM_LABELVEC + 8  # 1120


def mlp_kernel(x_ref, w1_ref, b1_ref, w2_ref, b2_ref, o_ref):
    # x arrives f32 straight from HBM; cast to the matmul dtype here (VALU slot is idle
    # under the MXU, so the cast is hidden).
    x = x_ref[...].astype(w1_ref.dtype)
    # Layer 1: bf16 x bf16 MXU matmul, f32 accumulation, f32 bias, ReLU.
    h = jnp.dot(x, w1_ref[...], preferred_element_type=jnp.float32) + b1_ref[...]
    h = jnp.maximum(h, 0.0)
    # Layer 2: f32 accumulation + f32 bias, cast only at the final lane-dense store.
    o_ref[...] = (
        jnp.dot(h.astype(w2_ref.dtype), w2_ref[...], preferred_element_type=jnp.float32)
        + b2_ref[...]
    ).astype(o_ref.dtype)


def _round_up(n, m):
    return ((n + m - 1) // m) * m


def _pad_axis(a, axis, multiple):
    size = a.shape[axis]
    pad = (-size) % multiple
    if pad == 0:
        return a
    widths = [(0, 0)] * a.ndim
    widths[axis] = (0, pad)
    return jnp.pad(a, widths)


def relation_pred_forward(x, w1, b1, w2, b2, *, tb=512,
                          compute_dtype=jnp.bfloat16, out_dtype=jnp.bfloat16):
    """x: (B, 1120) f32; w1: (1120, 512); b1: (512,) or (1, 512); w2: (512, 71); b2: (71,) or (1, 71)."""
    B, D = x.shape
    H = w1.shape[1]
    R = w2.shape[1]

    # Tiny one-time weight prep: cast to bf16; pad the output dim 71 -> 128 lanes so the final
    # store is unmasked.  x itself is neither padded nor cast in the wrapper (no extra HBM pass).
    w1c = w1.astype(compute_dtype)
    w2c = _pad_axis(w2, 1, 128).astype(compute_dtype)
    b1c = b1.reshape(1, H).astype(jnp.float32)
    b2c = _pad_axis(b2.reshape(1, R), 1, 128).astype(jnp.float32)
    Rp = w2c.shape[1]

    # Adaptive batch tile: never burn MXU rows on padding for small B (keep sublane=8 alignment).
    tb_eff = min(tb, _round_up(B, 8))
    # Megacore (v7x): for large batches cap the tile so the batch grid has >= 2 parallel steps.
    if B >= 512:
        tb_eff = min(tb_eff, _round_up(pl.cdiv(B, 2), 256))
    grid = (pl.cdiv(B, tb_eff),)

    flops = 2 * B * (D * H + H * Rp)
    bytes_accessed = (
        x.size * x.dtype.itemsize
        + w1c.size * w1c.dtype.itemsize
        + w2c.size * w2c.dtype.itemsize
        + b1c.size * 4
        + b2c.size * 4
        + B * Rp * jnp.dtype(out_dtype).itemsize
    )

    invariant = dict(pipeline_mode=pl.Buffered(1))  # grid-invariant blocks: single-buffer

    out = pl.pallas_call(
        mlp_kernel,
        out_shape=jax.ShapeDtypeStruct((B, Rp), out_dtype),
        grid_spec=pltpu.PrefetchScalarGridSpec(
            num_scalar_prefetch=0,
            grid=grid,
            in_specs=[
                pl.BlockSpec((tb_eff, D), lambda i: (i, 0)),           # x: streamed over batch, full K
                pl.BlockSpec((D, H), lambda i: (0, 0), **invariant),   # W1 (whole, VMEM-resident)
                pl.BlockSpec((1, H), lambda i: (0, 0), **invariant),   # b1
                pl.BlockSpec((H, Rp), lambda i: (0, 0), **invariant),  # W2 (whole, 128-lane padded)
                pl.BlockSpec((1, Rp), lambda i: (0, 0), **invariant),  # b2 (padded)
            ],
            out_specs=pl.BlockSpec((tb_eff, Rp), lambda i: (i, 0)),
        ),
        compiler_params=pltpu.CompilerParams(
            dimension_semantics=("parallel",),
        ),
        cost_estimate=pl.CostEstimate(
            flops=flops, transcendentals=0, bytes_accessed=bytes_accessed
        ),
    )(x, w1c, b1c, w2c, b2c)

    # Drop the padded output columns (batch was never padded, so rows are already exact).
    return out[:, :R]


def init_params(key):
    # Deterministic synthetic init (PyTorch-style uniform fan-in bounds).
    k1, k2, k3, k4 = jax.random.split(key, 4)
    bound1 = 1.0 / (IN_DIM ** 0.5)
    bound2 = 1.0 / (NUM_LATENT ** 0.5)
    w1 = jax.random.uniform(k1, (IN_DIM, NUM_LATENT), jnp.float32, -bound1, bound1)
    b1 = jax.random.uniform(k2, (1, NUM_LATENT), jnp.float32, -bound1, bound1)
    w2 = jax.random.uniform(k3, (NUM_LATENT, NUM_RELATIONS), jnp.float32, -bound2, bound2)
    b2 = jax.random.uniform(k4, (1, NUM_RELATIONS), jnp.float32, -bound2, bound2)
    return w1, b1, w2, b2


if __name__ == "__main__":
    key = jax.random.PRNGKey(0)
    kx, kp = jax.random.split(key)
    batch = 8  # small demo batch; adaptive tiling keeps the kernel tile at 8 rows (no MXU waste)
    x = jax.random.normal(kx, (batch, IN_DIM), jnp.float32)
    w1, b1, w2, b2 = init_params(kp)

    out = relation_pred_forward(x, w1, b1, w2, b2)
    out = jax.block_until_ready(out)
    assert out.shape == (batch, NUM_RELATIONS)

    out_f32 = out.astype(jnp.float32)

    # Reference applying the same operand/output rounding as the kernel (f32 accumulation).
    xb = x.astype(jnp.bfloat16).astype(jnp.float32)
    w1b = w1.astype(jnp.bfloat16).astype(jnp.float32)
    w2b = w2.astype(jnp.bfloat16).astype(jnp.float32)
    h = jnp.maximum(xb @ w1b + b1, 0.0)
    ref_bf16 = h.astype(jnp.bfloat16).astype(jnp.float32) @ w2b + b2
    assert jnp.allclose(out_f32, ref_bf16, atol=2e-2, rtol=2e-2)

    # Loose sanity check against the pure-f32 PyTorch forward semantics.
    ref_f32 = jnp.maximum(x @ w1 + b1, 0.0) @ w2 + b2
    assert jnp.allclose(out_f32, ref_f32, atol=1e-1, rtol=1e-1)

    print("KERNEL_OK")
</pallas_src>

<mosaic_0001>
module attributes {stable_mosaic.version = 11 : i64} {
  func.func @mlp_kernel(%arg0: i32, %arg1: memref<8x1120xf32, #tpu.memory_space<vmem>>, %arg2: memref<1120x512xbf16, #tpu.memory_space<vmem>>, %arg3: memref<1x512xf32, #tpu.memory_space<vmem>>, %arg4: memref<512x128xbf16, #tpu.memory_space<vmem>>, %arg5: memref<1x128xf32, #tpu.memory_space<vmem>>, %arg6: memref<8x128xbf16, #tpu.memory_space<vmem>>) attributes {dimension_semantics = [#tpu.dimension_semantics<parallel>], iteration_bounds = array<i64: 1>, scalar_prefetch = 0 : i64, scratch_operands = 0 : i64, tpu.core_type = #tpu.core_type<tc>, window_params = [{transform_indices = @transform_0, window_bounds = array<i64: 8, 1120>}, {pipeline_mode = #tpu.pipeline_mode<synchronous>, transform_indices = @transform_1, window_bounds = array<i64: 1120, 512>}, {pipeline_mode = #tpu.pipeline_mode<synchronous>, transform_indices = @transform_2, window_bounds = array<i64: 1, 512>}, {pipeline_mode = #tpu.pipeline_mode<synchronous>, transform_indices = @transform_3, window_bounds = array<i64: 512, 128>}, {pipeline_mode = #tpu.pipeline_mode<synchronous>, transform_indices = @transform_4, window_bounds = array<i64: 1, 128>}, {transform_indices = @transform_5, window_bounds = array<i64: 8, 128>}]} {
    %c0 = arith.constant 0 : index
    %c0_0 = arith.constant 0 : index
    %0 = vector.load %arg1[%c0, %c0_0] : memref<8x1120xf32, #tpu.memory_space<vmem>>, vector<8x1120xf32>
    %1 = arith.truncf %0 : vector<8x1120xf32> to vector<8x1120xbf16>
    %c0_1 = arith.constant 0 : index
    %c0_2 = arith.constant 0 : index
    %2 = vector.load %arg2[%c0_1, %c0_2] : memref<1120x512xbf16, #tpu.memory_space<vmem>>, vector<1120x512xbf16>
    %cst = arith.constant dense<0.000000e+00> : vector<8x512xf32>
    %3 = tpu.matmul %1, %2, %cst {dimension_numbers = #tpu.dot_dimension_numbers<[1], [0], [0], [1], [0, 0, 1, 1], [], []>} : vector<8x1120xbf16>, vector<1120x512xbf16>, vector<8x512xf32> -> vector<8x512xf32>
    %c0_3 = arith.constant 0 : index
    %c0_4 = arith.constant 0 : index
    %4 = vector.load %arg3[%c0_3, %c0_4] : memref<1x512xf32, #tpu.memory_space<vmem>>, vector<1x512xf32>
    %5 = vector.broadcast %4 : vector<1x512xf32> to vector<8x512xf32>
    %6 = arith.addf %3, %5 : vector<8x512xf32>
    %cst_5 = arith.constant 0.000000e+00 : f32
    %7 = vector.broadcast %cst_5 : f32 to vector<8x512xf32>
    %8 = arith.maximumf %6, %7 : vector<8x512xf32>
    %9 = arith.truncf %8 : vector<8x512xf32> to vector<8x512xbf16>
    %c0_6 = arith.constant 0 : index
    %c0_7 = arith.constant 0 : index
    %10 = vector.load %arg4[%c0_6, %c0_7] : memref<512x128xbf16, #tpu.memory_space<vmem>>, vector<512x128xbf16>
    %cst_8 = arith.constant dense<0.000000e+00> : vector<8x128xf32>
    %11 = tpu.matmul %9, %10, %cst_8 {dimension_numbers = #tpu.dot_dimension_numbers<[1], [0], [0], [1], [0, 0, 1, 1], [], []>} : vector<8x512xbf16>, vector<512x128xbf16>, vector<8x128xf32> -> vector<8x128xf32>
    %c0_9 = arith.constant 0 : index
    %c0_10 = arith.constant 0 : index
    %12 = vector.load %arg5[%c0_9, %c0_10] : memref<1x128xf32, #tpu.memory_space<vmem>>, vector<1x128xf32>
    %13 = vector.broadcast %12 : vector<1x128xf32> to vector<8x128xf32>
    %14 = arith.addf %11, %13 : vector<8x128xf32>
    %15 = arith.truncf %14 : vector<8x128xf32> to vector<8x128xbf16>
    %c0_11 = arith.constant 0 : index
    %c0_12 = arith.constant 0 : index
    %16 = vector.load %arg6[%c0_11, %c0_12] : memref<8x128xbf16, #tpu.memory_space<vmem>>, vector<8x128xbf16>
    tpu.vector_store %arg6[%c0_11, %c0_12], %15 {strides = array<i32>} : memref<8x128xbf16, #tpu.memory_space<vmem>>, vector<8x128xbf16>,
    return
  }
  func.func @transform_0(%arg0: i32) -> (i32, i32) {
    %c0_i32 = arith.constant 0 : i32
    %c0_i32_0 = arith.constant 0 : i32
    return %arg0, %c0_i32 : i32, i32
  }
  func.func @transform_1(%arg0: i32) -> (i32, i32) {
    %c0_i32 = arith.constant 0 : i32
    %c0_i32_0 = arith.constant 0 : i32
    %c0_i32_1 = arith.constant 0 : i32
    return %c0_i32, %c0_i32_0 : i32, i32
  }
  func.func @transform_2(%arg0: i32) -> (i32, i32) {
    %c0_i32 = arith.constant 0 : i32
    %c0_i32_0 = arith.constant 0 : i32
    %c0_i32_1 = arith.constant 0 : i32
    return %c0_i32, %c0_i32_0 : i32, i32
  }
  func.func @transform_3(%arg0: i32) -> (i32, i32) {
    %c0_i32 = arith.constant 0 : i32
    %c0_i32_0 = arith.constant 0 : i32
    %c0_i32_1 = arith.constant 0 : i32
    return %c0_i32, %c0_i32_0 : i32, i32
  }
  func.func @transform_4(%arg0: i32) -> (i32, i32) {
    %c0_i32 = arith.constant 0 : i32
    %c0_i32_0 = arith.constant 0 : i32
    %c0_i32_1 = arith.constant 0 : i32
    return %c0_i32, %c0_i32_0 : i32, i32
  }
  func.func @transform_5(%arg0: i32) -> (i32, i32) {
    %c0_i32 = arith.constant 0 : i32
    %c0_i32_0 = arith.constant 0 : i32
    return %arg0, %c0_i32 : i32, i32
  }
}

</mosaic_0001>

<llo_original>
// kernel: tpu_custom_call.1
$region0: #{tpu_custom_call.1}
  #allocation0 [shape = 'u32[]', space=smem, size = 0x4, offset = 0x4, fixed_abs, tag = 'smem constant byte address 0x4 - core index']
  #allocation1 [shape = 'u32[144,128]{1,0:T(1,128)}', space=vmem, size = 0x12000, scoped, tag = 'internal scratch']
  %s0 = inlined_call_operand.hbm [shape: f32[8,1120], index: 0, kind: input, shape index: {}]
  %s1 = inlined_call_operand.hbm [shape: bf16[1120,512], index: 1, kind: input, shape index: {}]
  %s2 = inlined_call_operand.hbm [shape: f32[1,512], index: 2, kind: input, shape index: {}]
  %s3 = inlined_call_operand.hbm [shape: bf16[512,128], index: 3, kind: input, shape index: {}]
  %s4 = inlined_call_operand.hbm [shape: f32[1,128], index: 4, kind: input, shape index: {}]
  %s5 = inlined_call_operand.hbm [shape: bf16[8,128], index: 5, kind: output, shape index: {}]
  %s6 = sld [smem:[#allocation0]]
  $region50: #{tpu_custom_call.1} parent=0
    _
  %s8 = ssub.s32 1, %s6
  %s9 = scalar_select 0, %s8, %s6
  $region1: #{tpu_custom_call.1} parent=0
    #allocation2 [shape = 'u8[36864]{0}', space=vmem, size = 0x9000, scoped, tag = 'input window, operand 0, single buffered']
    #allocation3 [shape = 's32[1]{0}', space=sflag, size = 0x4, scoped, tag = 'scoped memory for tpu_custom_call.1']
    #allocation4 [shape = 's32[1]{0}', space=sflag, size = 0x4, scoped, tag = 'scoped memory for tpu_custom_call.1']
    #allocation5 [shape = 'u8[1146880]{0}', space=vmem, size = 0x118000, scoped, tag = 'input window, operand 1, single buffered']
    #allocation6 [shape = 's32[1]{0}', space=sflag, size = 0x4, scoped, tag = 'scoped memory for tpu_custom_call.1']
    #allocation7 [shape = 'u8[2048]{0}', space=vmem, size = 0x800, scoped, tag = 'input window, operand 2, single buffered']
    #allocation8 [shape = 'u8[131072]{0}', space=vmem, size = 0x20000, scoped, tag = 'input window, operand 3, single buffered']
    #allocation9 [shape = 's32[1]{0}', space=sflag, size = 0x4, scoped, tag = 'scoped memory for tpu_custom_call.1']
    #allocation10 [shape = 'u8[512]{0}', space=vmem, size = 0x400, scoped, tag = 'input window, operand 4, single buffered']
    #allocation11 [shape = 'u8[2048]{0}', space=vmem, size = 0x800, scoped, tag = 'output window, operand 0, single buffered']
    %10 = vsyncpa [#allocation3], 0
    %11 = vsyncpa [#allocation6], 0
    %12 = vsyncpa [#allocation9], 0
    %13 = vsyncpa [#allocation4], 0
    // Predicated region
    $region2: #{tpu_custom_call.1} parent=1 // pred_check
      _
    $region3: #{tpu_custom_call.1} parent=1 // pred_check_branch
      %15 = sbr.rel (0) target = $region5
    $region4: #{tpu_custom_call.1} parent=1 // pred_region
      %s17 = ssub.s32 1152, 1152
      %18 = vsyncadd [#allocation3], %s17
      %s20 = sshll.u32 [#allocation2], 4
      %s21 = int_to_ptr.vmem [resolvable:$true] %s20
      %23 = dma.hbm_to_vmem [thread:$0]  %s0, 1152, %s21, [#allocation3]
    $region5: #{tpu_custom_call.1} parent=1 // pred_fallthru
      _
    // Predicated region
    $region6: #{tpu_custom_call.1} parent=1 // pred_check
      _
    $region7: #{tpu_custom_call.1} parent=1 // pred_check_branch
      %25 = sbr.rel (0) target = $region9
    $region8: #{tpu_custom_call.1} parent=1 // pred_region
      %s27 = ssub.s32 35840, 35840
      %28 = vsyncadd [#allocation6], %s27
      %s29 = sshll.u32 [#allocation5], 4
      %s30 = int_to_ptr.vmem [resolvable:$true] %s29
      %35 = dma.hbm_to_vmem [thread:$0]  %s1, 35840, %s30, [#allocation6], 256, 256, 16
    $region9: #{tpu_custom_call.1} parent=1 // pred_fallthru
      _
    // Predicated region
    $region10: #{tpu_custom_call.1} parent=1 // pred_check
      _
    $region11: #{tpu_custom_call.1} parent=1 // pred_check_branch
      %37 = sbr.rel (0) target = $region13
    $region12: #{tpu_custom_call.1} parent=1 // pred_region
      %s39 = ssub.s32 64, 64
      %40 = vsyncadd [#allocation6], %s39
      %s42 = sshll.u32 [#allocation7], 4
      %s43 = int_to_ptr.vmem [resolvable:$true] %s42
      %45 = dma.hbm_to_vmem [thread:$0]  %s2, 64, %s43, [#allocation6]
    $region13: #{tpu_custom_call.1} parent=1 // pred_fallthru
      _
    // Predicated region
    $region14: #{tpu_custom_call.1} parent=1 // pred_check
      _
    $region15: #{tpu_custom_call.1} parent=1 // pred_check_branch
      %47 = sbr.rel (0) target = $region17
    $region16: #{tpu_custom_call.1} parent=1 // pred_region
      %s49 = ssub.s32 4096, 4096
      %50 = vsyncadd [#allocation9], %s49
      %s51 = sshll.u32 [#allocation8], 4
      %s52 = int_to_ptr.vmem [resolvable:$true] %s51
      %57 = dma.hbm_to_vmem [thread:$0]  %s3, 4096, %s52, [#allocation9], 64, 64, 4
    $region17: #{tpu_custom_call.1} parent=1 // pred_fallthru
      _
    // Predicated region
    $region18: #{tpu_custom_call.1} parent=1 // pred_check
      _
    $region19: #{tpu_custom_call.1} parent=1 // pred_check_branch
      %59 = sbr.rel (0) target = $region21
    $region20: #{tpu_custom_call.1} parent=1 // pred_region
      %s61 = ssub.s32 16, 16
      %62 = vsyncadd [#allocation9], %s61
      %s64 = sshll.u32 [#allocation10], 4
      %s65 = int_to_ptr.vmem [resolvable:$true] %s64
      %67 = dma.hbm_to_vmem [thread:$0]  %s4, 16, %s65, [#allocation9]
    $region21: #{tpu_custom_call.1} parent=1 // pred_fallthru
      _
    // Predicated region
    $region22: #{tpu_custom_call.1} parent=1 // pred_check
      _
    $region23: #{tpu_custom_call.1} parent=1 // pred_check_branch
      %69 = sbr.rel (0) target = $region25
    $region24: #{tpu_custom_call.1} parent=1 // pred_region
      %70 = dma.done [#allocation3], 1152
    $region25: #{tpu_custom_call.1} parent=1 // pred_fallthru
      _
    // Predicated region
    $region26: #{tpu_custom_call.1} parent=1 // pred_check
      _
    $region27: #{tpu_custom_call.1} parent=1 // pred_check_branch
      %72 = sbr.rel (0) target = $region29
    $region28: #{tpu_custom_call.1} parent=1 // pred_region
      %73 = dma.done [#allocation6], 35840
    $region29: #{tpu_custom_call.1} parent=1 // pred_fallthru
      _
    // Predicated region
    $region30: #{tpu_custom_call.1} parent=1 // pred_check
      _
    $region31: #{tpu_custom_call.1} parent=1 // pred_check_branch
      %75 = sbr.rel (0) target = $region33
    $region32: #{tpu_custom_call.1} parent=1 // pred_region
      %76 = dma.done [#allocation6], 64
    $region33: #{tpu_custom_call.1} parent=1 // pred_fallthru
      _
    // Predicated region
    $region34: #{tpu_custom_call.1} parent=1 // pred_check
      _
    $region35: #{tpu_custom_call.1} parent=1 // pred_check_branch
      %78 = sbr.rel (0) target = $region37
    $region36: #{tpu_custom_call.1} parent=1 // pred_region
      %79 = dma.done [#allocation9], 4096
    $region37: #{tpu_custom_call.1} parent=1 // pred_fallthru
      _
    // Predicated region
    $region38: #{tpu_custom_call.1} parent=1 // pred_check
      _
    $region39: #{tpu_custom_call.1} parent=1 // pred_check_branch
      %81 = sbr.rel (0) target = $region41
    $region40: #{tpu_custom_call.1} parent=1 // pred_region
      %82 = dma.done [#allocation9], 16
    $region41: #{tpu_custom_call.1} parent=1 // pred_fallthru
      _
    %v84 = vld [vmem:[#allocation2] sm:$0xff]
    %v85 = vld [vmem:[#allocation2 + $0x8] sm:$0xff]
    %v86 = vld [vmem:[#allocation2 + $0x10] sm:$0xff]
    %v87 = vld [vmem:[#allocation2 + $0x18] sm:$0xff]
    %v88 = vld [vmem:[#allocation2 + $0x20] sm:$0xff]
    %v89 = vld [vmem:[#allocation2 + $0x28] sm:$0xff]
    %v90 = vld [vmem:[#allocation2 + $0x30] sm:$0xff]
    %v91 = vld [vmem:[#allocation2 + $0x38] sm:$0xff]
    %v92 = vld [vmem:[#allocation2 + $0x40] sm:$0xff]
    %v93 = vpack.c.bf16 %v84, %v84
    %v94 = vpack.c.bf16 %v85, %v85
    %v95 = vpack.c.bf16 %v86, %v86
    %v96 = vpack.c.bf16 %v87, %v87
    %v97 = vpack.c.bf16 %v88, %v88
    %v98 = vpack.c.bf16 %v89, %v89
    %v99 = vpack.c.bf16 %v90, %v90
    %v100 = vpack.c.bf16 %v91, %v91
    %v101 = vpack.c.bf16 %v92, %v92
    %v102 = vld [vmem:[#allocation5] sm:$0xff]
    %v103 = vld [vmem:[#allocation5 + $0x8] sm:$0xff]
    %v104 = vld [vmem:[#allocation5 + $0x10] sm:$0xff]
    %v105 = vld [vmem:[#allocation5 + $0x18] sm:$0xff]
    %v106 = vld [vmem:[#allocation5 + $0x20] sm:$0xff]
    %v107 = vld [vmem:[#allocation5 + $0x28] sm:$0xff]
    %v108 = vld [vmem:[#allocation5 + $0x30] sm:$0xff]
    %v109 = vld [vmem:[#allocation5 + $0x38] sm:$0xff]
    %v110 = vld [vmem:[#allocation5 + $0x40] sm:$0xff]
    %v111 = vld [vmem:[#allocation5 + $0x48] sm:$0xff]
    %v112 = vld [vmem:[#allocation5 + $0x50] sm:$0xff]
    %v113 = vld [vmem:[#allocation5 + $0x58] sm:$0xff]
    %v114 = vld [vmem:[#allocation5 + $0x60] sm:$0xff]
    %v115 = vld [vmem:[#allocation5 + $0x68] sm:$0xff]
    %v116 = vld [vmem:[#allocation5 + $0x70] sm:$0xff]
    %v117 = vld [vmem:[#allocation5 + $0x78] sm:$0xff]
    %v118 = vld [vmem:[#allocation5 + $0x80] sm:$0xff]
    %v119 = vld [vmem:[#allocation5 + $0x88] sm:$0xff]
    %v120 = vld [vmem:[#allocation5 + $0x90] sm:$0xff]
    %v121 = vld [vmem:[#allocation5 + $0x98] sm:$0xff]
    %v122 = vld [vmem:[#allocation5 + $0xa0] sm:$0xff]
    %v123 = vld [vmem:[#allocation5 + $0xa8] sm:$0xff]
    %v124 = vld [vmem:[#allocation5 + $0xb0] sm:$0xff]
    %v125 = vld [vmem:[#allocation5 + $0xb8] sm:$0xff]
    %v126 = vld [vmem:[#allocation5 + $0xc0] sm:$0xff]
    %v127 = vld [vmem:[#allocation5 + $0xc8] sm:$0xff]
    %v128 = vld [vmem:[#allocation5 + $0xd0] sm:$0xff]
    %v129 = vld [vmem:[#allocation5 + $0xd8] sm:$0xff]
    %v130 = vld [vmem:[#allocation5 + $0xe0] sm:$0xff]
    %v131 = vld [vmem:[#allocation5 + $0xe8] sm:$0xff]
    %v132 = vld [vmem:[#allocation5 + $0xf0] sm:$0xff]
    %v133 = vld [vmem:[#allocation5 + $0xf8] sm:$0xff]
    %v134 = vld [vmem:[#allocation5 + $0x100] sm:$0xff]
    %v135 = vld [vmem:[#allocation5 + $0x108] sm:$0xff]
    %v136 = vld [vmem:[#allocation5 + $0x110] sm:$0xff]
    %v137 = vld [vmem:[#allocation5 + $0x118] sm:$0xff]
    %v138 = vld [vmem:[#allocation5 + $0x120] sm:$0xff]
    %v139 = vld [vmem:[#allocation5 + $0x128] sm:$0xff]
    %v140 = vld [vmem:[#allocation5 + $0x130] sm:$0xff]
    %v141 = vld [vmem:[#allocation5 + $0x138] sm:$0xff]
    %v142 = vld [vmem:[#allocation5 + $0x140] sm:$0xff]
    %v143 = vld [vmem:[#allocation5 + $0x148] sm:$0xff]
    %v144 = vld [vmem:[#allocation5 + $0x150] sm:$0xff]
    %v145 = vld [vmem:[#allocation5 + $0x158] sm:$0xff]
    %v146 = vld [vmem:[#allocation5 + $0x160] sm:$0xff]
    %v147 = vld [vmem:[#allocation5 + $0x168] sm:$0xff]
    %v148 = vld [vmem:[#allocation5 + $0x170] sm:$0xff]
    %v149 = vld [vmem:[#allocation5 + $0x178] sm:$0xff]
    %v150 = vld [vmem:[#allocation5 + $0x180] sm:$0xff]
    %v151 = vld [vmem:[#allocation5 + $0x188] sm:$0xff]
    %v152 = vld [vmem:[#allocation5 + $0x190] sm:$0xff]
    %v153 = vld [vmem:[#allocation5 + $0x198] sm:$0xff]
    %v154 = vld [vmem:[#allocation5 + $0x1a0] sm:$0xff]
    %v155 = vld [vmem:[#allocation5 + $0x1a8] sm:$0xff]
    %v156 = vld [vmem:[#allocation5 + $0x1b0] sm:$0xff]
    %v157 = vld [vmem:[#allocation5 + $0x1b8] sm:$0xff]
    %v158 = vld [vmem:[#allocation5 + $0x1c0] sm:$0xff]
    %v159 = vld [vmem:[#allocation5 + $0x1c8] sm:$0xff]
    %v160 = vld [vmem:[#allocation5 + $0x1d0] sm:$0xff]
    %v161 = vld [vmem:[#allocation5 + $0x1d8] sm:$0xff]
    %v162 = vld [vmem:[#allocation5 + $0x1e0] sm:$0xff]
    %v163 = vld [vmem:[#allocation5 + $0x1e8] sm:$0xff]
    %v164 = vld [vmem:[#allocation5 + $0x1f0] sm:$0xff]
    %v165 = vld [vmem:[#allocation5 + $0x1f8] sm:$0xff]
    %v166 = vld [vmem:[#allocation5 + $0x200] sm:$0xff]
    %v167 = vld [vmem:[#allocation5 + $0x208] sm:$0xff]
    %v168 = vld [vmem:[#allocation5 + $0x210] sm:$0xff]
    %v169 = vld [vmem:[#allocation5 + $0x218] sm:$0xff]
    %v170 = vld [vmem:[#allocation5 + $0x220] sm:$0xff]
    %v171 = vld [vmem:[#allocation5 + $0x228] sm:$0xff]
    %v172 = vld [vmem:[#allocation5 + $0x230] sm:$0xff]
    %v173 = vld [vmem:[#allocation5 + $0x238] sm:$0xff]
    %v174 = vld [vmem:[#allocation5 + $0x240] sm:$0xff]
    %v175 = vld [vmem:[#allocation5 + $0x248] sm:$0xff]
    %v176 = vld [vmem:[#allocation5 + $0x250] sm:$0xff]
    %v177 = vld [vmem:[#allocation5 + $0x258] sm:$0xff]
    %v178 = vld [vmem:[#allocation5 + $0x260] sm:$0xff]
    %v179 = vld [vmem:[#allocation5 + $0x268] sm:$0xff]
    %v180 = vld [vmem:[#allocation5 + $0x270] sm:$0xff]
    %v181 = vld [vmem:[#allocation5 + $0x278] sm:$0xff]
    %v182 = vld [vmem:[#allocation5 + $0x280] sm:$0xff]
    %v183 = vld [vmem:[#allocation5 + $0x288] sm:$0xff]
    %v184 = vld [vmem:[#allocation5 + $0x290] sm:$0xff]
    %v185 = vld [vmem:[#allocation5 + $0x298] sm:$0xff]
    %v186 = vld [vmem:[#allocation5 + $0x2a0] sm:$0xff]
    %v187 = vld [vmem:[#allocation5 + $0x2a8] sm:$0xff]
    %v188 = vld [vmem:[#allocation5 + $0x2b0] sm:$0xff]
    %v189 = vld [vmem:[#allocation5 + $0x2b8] sm:$0xff]
    %v190 = vld [vmem:[#allocation5 + $0x2c0] sm:$0xff]
    %v191 = vld [vmem:[#allocation5 + $0x2c8] sm:$0xff]
    %v192 = vld [vmem:[#allocation5 + $0x2d0] sm:$0xff]
    %v193 = vld [vmem:[#allocation5 + $0x2d8] sm:$0xff]
    %v194 = vld [vmem:[#allocation5 + $0x2e0] sm:$0xff]
    %v195 = vld [vmem:[#allocation5 + $0x2e8] sm:$0xff]
    %v196 = vld [vmem:[#allocation5 + $0x2f0] sm:$0xff]
    %v197 = vld [vmem:[#allocation5 + $0x2f8] sm:$0xff]
    %v198 = vld [vmem:[#allocation5 + $0x300] sm:$0xff]
    %v199 = vld [vmem:[#allocation5 + $0x308] sm:$0xff]
    %v200 = vld [vmem:[#allocation5 + $0x310] sm:$0xff]
    %v201 = vld [vmem:[#allocation5 + $0x318] sm:$0xff]
    %v202 = vld [vmem:[#allocation5 + $0x320] sm:$0xff]
    %v203 = vld [vmem:[#allocation5 + $0x328] sm:$0xff]
    %v204 = vld [vmem:[#allocation5 + $0x330] sm:$0xff]
    %v205 = vld [vmem:[#allocation5 + $0x338] sm:$0xff]
    %v206 = vld [vmem:[#allocation5 + $0x340] sm:$0xff]
    %v207 = vld [vmem:[#allocation5 + $0x348] sm:$0xff]
    %v208 = vld [vmem:[#allocation5 + $0x350] sm:$0xff]
    %v209 = vld [vmem:[#allocation5 + $0x358] sm:$0xff]
    %v210 = vld [vmem:[#allocation5 + $0x360] sm:$0xff]
    %v211 = vld [vmem:[#allocation5 + $0x368] sm:$0xff]
    %v212 = vld [vmem:[#allocation5 + $0x370] sm:$0xff]
    %v213 = vld [vmem:[#allocation5 + $0x378] sm:$0xff]
    %v214 = vld [vmem:[#allocation5 + $0x380] sm:$0xff]
    %v215 = vld [vmem:[#allocation5 + $0x388] sm:$0xff]
    %v216 = vld [vmem:[#allocation5 + $0x390] sm:$0xff]
    %v217 = vld [vmem:[#allocation5 + $0x398] sm:$0xff]
    %v218 = vld [vmem:[#allocation5 + $0x3a0] sm:$0xff]
    %v219 = vld [vmem:[#allocation5 + $0x3a8] sm:$0xff]
    %v220 = vld [vmem:[#allocation5 + $0x3b0] sm:$0xff]
    %v221 = vld [vmem:[#allocation5 + $0x3b8] sm:$0xff]
    %v222 = vld [vmem:[#allocation5 + $0x3c0] sm:$0xff]
    %v223 = vld [vmem:[#allocation5 + $0x3c8] sm:$0xff]
    %v224 = vld [vmem:[#allocation5 + $0x3d0] sm:$0xff]
    %v225 = vld [vmem:[#allocation5 + $0x3d8] sm:$0xff]
    %v226 = vld [vmem:[#allocation5 + $0x3e0] sm:$0xff]
    %v227 = vld [vmem:[#allocation5 + $0x3e8] sm:$0xff]
    %v228 = vld [vmem:[#allocation5 + $0x3f0] sm:$0xff]
    %v229 = vld [vmem:[#allocation5 + $0x3f8] sm:$0xff]
    %v230 = vld [vmem:[#allocation5 + $0x400] sm:$0xff]
    %v231 = vld [vmem:[#allocation5 + $0x408] sm:$0xff]
    %v232 = vld [vmem:[#allocation5 + $0x410] sm:$0xff]
    %v233 = vld [vmem:[#allocation5 + $0x418] sm:$0xff]
    %v234 = vld [vmem:[#allocation5 + $0x420] sm:$0xff]
    %v235 = vld [vmem:[#allocation5 + $0x428] sm:$0xff]
    %v236 = vld [vmem:[#allocation5 + $0x430] sm:$0xff]
    %v237 = vld [vmem:[#allocation5 + $0x438] sm:$0xff]
    %v238 = vld [vmem:[#allocation5 + $0x440] sm:$0xff]
    %v239 = vld [vmem:[#allocation5 + $0x448] sm:$0xff]
    %v240 = vld [vmem:[#allocation5 + $0x450] sm:$0xff]
    %v241 = vld [vmem:[#allocation5 + $0x458] sm:$0xff]
    %v242 = vld [vmem:[#allocation5 + $0x460] sm:$0xff]
    %v243 = vld [vmem:[#allocation5 + $0x468] sm:$0xff]
    %v244 = vld [vmem:[#allocation5 + $0x470] sm:$0xff]
    %v245 = vld [vmem:[#allocation5 + $0x478] sm:$0xff]
    %v246 = vld [vmem:[#allocation5 + $0x480] sm:$0xff]
    %v247 = vld [vmem:[#allocation5 + $0x488] sm:$0xff]
    %v248 = vld [vmem:[#allocation5 + $0x490] sm:$0xff]
    %v249 = vld [vmem:[#allocation5 + $0x498] sm:$0xff]
    %v250 = vld [vmem:[#allocation5 + $0x4a0] sm:$0xff]
    %v251 = vld [vmem:[#allocation5 + $0x4a8] sm:$0xff]
    %v252 = vld [vmem:[#allocation5 + $0x4b0] sm:$0xff]
    %v253 = vld [vmem:[#allocation5 + $0x4b8] sm:$0xff]
    %v254 = vld [vmem:[#allocation5 + $0x4c0] sm:$0xff]
    %v255 = vld [vmem:[#allocation5 + $0x4c8] sm:$0xff]
    %v256 = vld [vmem:[#allocation5 + $0x4d0] sm:$0xff]
    %v257 = vld [vmem:[#allocation5 + $0x4d8] sm:$0xff]
    %v258 = vld [vmem:[#allocation5 + $0x4e0] sm:$0xff]
    %v259 = vld [vmem:[#allocation5 + $0x4e8] sm:$0xff]
    %v260 = vld [vmem:[#allocation5 + $0x4f0] sm:$0xff]
    %v261 = vld [vmem:[#allocation5 + $0x4f8] sm:$0xff]
    %v262 = vld [vmem:[#allocation5 + $0x500] sm:$0xff]
    %v263 = vld [vmem:[#allocation5 + $0x508] sm:$0xff]
    %v264 = vld [vmem:[#allocation5 + $0x510] sm:$0xff]
    %v265 = vld [vmem:[#allocation5 + $0x518] sm:$0xff]
    %v266 = vld [vmem:[#allocation5 + $0x520] sm:$0xff]
    %v267 = vld [vmem:[#allocation5 + $0x528] sm:$0xff]
    %v268 = vld [vmem:[#allocation5 + $0x530] sm:$0xff]
    %v269 = vld [vmem:[#allocation5 + $0x538] sm:$0xff]
    %v270 = vld [vmem:[#allocation5 + $0x540] sm:$0xff]
    %v271 = vld [vmem:[#allocation5 + $0x548] sm:$0xff]
    %v272 = vld [vmem:[#allocation5 + $0x550] sm:$0xff]
    %v273 = vld [vmem:[#allocation5 + $0x558] sm:$0xff]
    %v274 = vld [vmem:[#allocation5 + $0x560] sm:$0xff]
    %v275 = vld [vmem:[#allocation5 + $0x568] sm:$0xff]
    %v276 = vld [vmem:[#allocation5 + $0x570] sm:$0xff]
    %v277 = vld [vmem:[#allocation5 + $0x578] sm:$0xff]
    %v278 = vld [vmem:[#allocation5 + $0x580] sm:$0xff]
    %v279 = vld [vmem:[#allocation5 + $0x588] sm:$0xff]
    %v280 = vld [vmem:[#allocation5 + $0x590] sm:$0xff]
    %v281 = vld [vmem:[#allocation5 + $0x598] sm:$0xff]
    %v282 = vld [vmem:[#allocation5 + $0x5a0] sm:$0xff]
    %v283 = vld [vmem:[#allocation5 + $0x5a8] sm:$0xff]
    %v284 = vld [vmem:[#allocation5 + $0x5b0] sm:$0xff]
    %v285 = vld [vmem:[#allocation5 + $0x5b8] sm:$0xff]
    %v286 = vld [vmem:[#allocation5 + $0x5c0] sm:$0xff]
    %v287 = vld [vmem:[#allocation5 + $0x5c8] sm:$0xff]
    %v288 = vld [vmem:[#allocation5 + $0x5d0] sm:$0xff]
    %v289 = vld [vmem:[#allocation5 + $0x5d8] sm:$0xff]
    %v290 = vld [vmem:[#allocation5 + $0x5e0] sm:$0xff]
    %v291 = vld [vmem:[#allocation5 + $0x5e8] sm:$0xff]
    %v292 = vld [vmem:[#allocation5 + $0x5f0] sm:$0xff]
    %v293 = vld [vmem:[#allocation5 + $0x5f8] sm:$0xff]
    %v294 = vld [vmem:[#allocation5 + $0x600] sm:$0xff]
    %v295 = vld [vmem:[#allocation5 + $0x608] sm:$0xff]
    %v296 = vld [vmem:[#allocation5 + $0x610] sm:$0xff]
    %v297 = vld [vmem:[#allocation5 + $0x618] sm:$0xff]
    %v298 = vld [vmem:[#allocation5 + $0x620] sm:$0xff]
    %v299 = vld [vmem:[#allocation5 + $0x628] sm:$0xff]
    %v300 = vld [vmem:[#allocation5 + $0x630] sm:$0xff]
    %v301 = vld [vmem:[#allocation5 + $0x638] sm:$0xff]
    %v302 = vld [vmem:[#allocation5 + $0x640] sm:$0xff]
    %v303 = vld [vmem:[#allocation5 + $0x648] sm:$0xff]
    %v304 = vld [vmem:[#allocation5 + $0x650] sm:$0xff]
    %v305 = vld [vmem:[#allocation5 + $0x658] sm:$0xff]
    %v306 = vld [vmem:[#allocation5 + $0x660] sm:$0xff]
    %v307 = vld [vmem:[#allocation5 + $0x668] sm:$0xff]
    %v308 = vld [vmem:[#allocation5 + $0x670] sm:$0xff]
    %v309 = vld [vmem:[#allocation5 + $0x678] sm:$0xff]
    %v310 = vld [vmem:[#allocation5 + $0x680] sm:$0xff]
    %v311 = vld [vmem:[#allocation5 + $0x688] sm:$0xff]
    %v312 = vld [vmem:[#allocation5 + $0x690] sm:$0xff]
    %v313 = vld [vmem:[#allocation5 + $0x698] sm:$0xff]
    %v314 = vld [vmem:[#allocation5 + $0x6a0] sm:$0xff]
    %v315 = vld [vmem:[#allocation5 + $0x6a8] sm:$0xff]
    %v316 = vld [vmem:[#allocation5 + $0x6b0] sm:$0xff]
    %v317 = vld [vmem:[#allocation5 + $0x6b8] sm:$0xff]
    %v318 = vld [vmem:[#allocation5 + $0x6c0] sm:$0xff]
    %v319 = vld [vmem:[#allocation5 + $0x6c8] sm:$0xff]
    %v320 = vld [vmem:[#allocation5 + $0x6d0] sm:$0xff]
    %v321 = vld [vmem:[#allocation5 + $0x6d8] sm:$0xff]
    %v322 = vld [vmem:[#allocation5 + $0x6e0] sm:$0xff]
    %v323 = vld [vmem:[#allocation5 + $0x6e8] sm:$0xff]
    %v324 = vld [vmem:[#allocation5 + $0x6f0] sm:$0xff]
    %v325 = vld [vmem:[#allocation5 + $0x6f8] sm:$0xff]
    %v326 = vld [vmem:[#allocation5 + $0x700] sm:$0xff]
    %v327 = vld [vmem:[#allocation5 + $0x708] sm:$0xff]
    %v328 = vld [vmem:[#allocation5 + $0x710] sm:$0xff]
    %v329 = vld [vmem:[#allocation5 + $0x718] sm:$0xff]
    %v330 = vld [vmem:[#allocation5 + $0x720] sm:$0xff]
    %v331 = vld [vmem:[#allocation5 + $0x728] sm:$0xff]
    %v332 = vld [vmem:[#allocation5 + $0x730] sm:$0xff]
    %v333 = vld [vmem:[#allocation5 + $0x738] sm:$0xff]
    %v334 = vld [vmem:[#allocation5 + $0x740] sm:$0xff]
    %v335 = vld [vmem:[#allocation5 + $0x748] sm:$0xff]
    %v336 = vld [vmem:[#allocation5 + $0x750] sm:$0xff]
    %v337 = vld [vmem:[#allocation5 + $0x758] sm:$0xff]
    %v338 = vld [vmem:[#allocation5 + $0x760] sm:$0xff]
    %v339 = vld [vmem:[#allocation5 + $0x768] sm:$0xff]
    %v340 = vld [vmem:[#allocation5 + $0x770] sm:$0xff]
    %v341 = vld [vmem:[#allocation5 + $0x778] sm:$0xff]
    %v342 = vld [vmem:[#allocation5 + $0x780] sm:$0xff]
    %v343 = vld [vmem:[#allocation5 + $0x788] sm:$0xff]
    %v344 = vld [vmem:[#allocation5 + $0x790] sm:$0xff]
    %v345 = vld [vmem:[#allocation5 + $0x798] sm:$0xff]
    %v346 = vld [vmem:[#allocation5 + $0x7a0] sm:$0xff]
    %v347 = vld [vmem:[#allocation5 + $0x7a8] sm:$0xff]
    %v348 = vld [vmem:[#allocation5 + $0x7b0] sm:$0xff]
    %v349 = vld [vmem:[#allocation5 + $0x7b8] sm:$0xff]
    %v350 = vld [vmem:[#allocation5 + $0x7c0] sm:$0xff]
    %v351 = vld [vmem:[#allocation5 + $0x7c8] sm:$0xff]
    %v352 = vld [vmem:[#allocation5 + $0x7d0] sm:$0xff]
    %v353 = vld [vmem:[#allocation5 + $0x7d8] sm:$0xff]
    %v354 = vld [vmem:[#allocation5 + $0x7e0] sm:$0xff]
    %v355 = vld [vmem:[#allocation5 + $0x7e8] sm:$0xff]
    %v356 = vld [vmem:[#allocation5 + $0x7f0] sm:$0xff]
    %v357 = vld [vmem:[#allocation5 + $0x7f8] sm:$0xff]
    %v358 = vld [vmem:[#allocation5 + $0x800] sm:$0xff]
    %v359 = vld [vmem:[#allocation5 + $0x808] sm:$0xff]
    %v360 = vld [vmem:[#allocation5 + $0x810] sm:$0xff]
    %v361 = vld [vmem:[#allocation5 + $0x818] sm:$0xff]
    %v362 = vld [vmem:[#allocation5 + $0x820] sm:$0xff]
    %v363 = vld [vmem:[#allocation5 + $0x828] sm:$0xff]
    %v364 = vld [vmem:[#allocation5 + $0x830] sm:$0xff]
    %v365 = vld [vmem:[#allocation5 + $0x838] sm:$0xff]
    %v366 = vld [vmem:[#allocation5 + $0x840] sm:$0xff]
    %v367 = vld [vmem:[#allocation5 + $0x848] sm:$0xff]
    %v368 = vld [vmem:[#allocation5 + $0x850] sm:$0xff]
    %v369 = vld [vmem:[#allocation5 + $0x858] sm:$0xff]
    %v370 = vld [vmem:[#allocation5 + $0x860] sm:$0xff]
    %v371 = vld [vmem:[#allocation5 + $0x868] sm:$0xff]
    %v372 = vld [vmem:[#allocation5 + $0x870] sm:$0xff]
    %v373 = vld [vmem:[#allocation5 + $0x878] sm:$0xff]
    %v374 = vld [vmem:[#allocation5 + $0x880] sm:$0xff]
    %v375 = vld [vmem:[#allocation5 + $0x888] sm:$0xff]
    %v376 = vld [vmem:[#allocation5 + $0x890] sm:$0xff]
    %v377 = vld [vmem:[#allocation5 + $0x898] sm:$0xff]
    %v378 = vld [vmem:[#allocation5 + $0x8a0] sm:$0xff]
    %v379 = vld [vmem:[#allocation5 + $0x8a8] sm:$0xff]
    %v380 = vld [vmem:[#allocation5 + $0x8b0] sm:$0xff]
    %v381 = vld [vmem:[#allocation5 + $0x8b8] sm:$0xff]
    %v382 = vld [vmem:[#allocation7] sm:$0xf]
    %v384 = vlaneseq
    %v385 = vshrl.u32 %v384, 7
    %v386 = vsub.s32 0, %v385
    %v387 = vrot.slane %v382, %v386
    %v388 = vlaneseq
    %v389 = vshrl.u32 %v388, 7
    %v390 = vsub.s32 1, %v389
    %v391 = vrot.slane %v382, %v390
    %v392 = vlaneseq
    %v393 = vshrl.u32 %v392, 7
    %v394 = vsub.s32 2, %v393
    %v395 = vrot.slane %v382, %v394
    %v396 = vlaneseq
    %v397 = vshrl.u32 %v396, 7
    %v398 = vsub.s32 3, %v397
    %v399 = vrot.slane %v382, %v398
    %v684 = vunpack.c.l.b16 %v102
    %v685 = vunpack.c.h.b16 %v102
    %v686 = vunpack.c.l.b16 %v103
    %v687 = vunpack.c.h.b16 %v103
    %v688 = vunpack.c.l.b16 %v104
    %v689 = vunpack.c.h.b16 %v104
    %v690 = vunpack.c.l.b16 %v105
    %v691 = vunpack.c.h.b16 %v105
    %v692 = vunpack.c.l.b16 %v106
    %v693 = vunpack.c.h.b16 %v106
    %v694 = vunpack.c.l.b16 %v107
    %v695 = vunpack.c.h.b16 %v107
    %v696 = vunpack.c.l.b16 %v108
    %v697 = vunpack.c.h.b16 %v108
    %v698 = vunpack.c.l.b16 %v109
    %v699 = vunpack.c.h.b16 %v109
    %v700 = vunpack.c.l.b16 %v110
    %v701 = vunpack.c.h.b16 %v110
    %v702 = vunpack.c.l.b16 %v111
    %v703 = vunpack.c.h.b16 %v111
    %v704 = vunpack.c.l.b16 %v112
    %v705 = vunpack.c.h.b16 %v112
    %v706 = vunpack.c.l.b16 %v113
    %v707 = vunpack.c.h.b16 %v113
    %v708 = vunpack.c.l.b16 %v114
    %v709 = vunpack.c.h.b16 %v114
    %v710 = vunpack.c.l.b16 %v115
    %v711 = vunpack.c.h.b16 %v115
    %v712 = vunpack.c.l.b16 %v116
    %v713 = vunpack.c.h.b16 %v116
    %v714 = vunpack.c.l.b16 %v117
    %v715 = vunpack.c.h.b16 %v117
    %v716 = vunpack.c.l.b16 %v118
    %v717 = vunpack.c.h.b16 %v118
    %v718 = vunpack.c.l.b16 %v119
    %v719 = vunpack.c.h.b16 %v119
    %v720 = vunpack.c.l.b16 %v120
    %v721 = vunpack.c.h.b16 %v120
    %v722 = vunpack.c.l.b16 %v121
    %v723 = vunpack.c.h.b16 %v121
    %v724 = vunpack.c.l.b16 %v122
    %v725 = vunpack.c.h.b16 %v122
    %v726 = vunpack.c.l.b16 %v123
    %v727 = vunpack.c.h.b16 %v123
    %v728 = vunpack.c.l.b16 %v124
    %v729 = vunpack.c.h.b16 %v124
    %v730 = vunpack.c.l.b16 %v125
    %v731 = vunpack.c.h.b16 %v125
    %v732 = vunpack.c.l.b16 %v126
    %v733 = vunpack.c.h.b16 %v126
    %v734 = vunpack.c.l.b16 %v127
    %v735 = vunpack.c.h.b16 %v127
    %v736 = vunpack.c.l.b16 %v128
    %v737 = vunpack.c.h.b16 %v128
    %v738 = vunpack.c.l.b16 %v129
    %v739 = vunpack.c.h.b16 %v129
    %v740 = vunpack.c.l.b16 %v130
    %v741 = vunpack.c.h.b16 %v130
    %v742 = vunpack.c.l.b16 %v131
    %v743 = vunpack.c.h.b16 %v131
    %v744 = vunpack.c.l.b16 %v132
    %v745 = vunpack.c.h.b16 %v132
    %v746 = vunpack.c.l.b16 %v133
    %v747 = vunpack.c.h.b16 %v133
    %v748 = vunpack.c.l.b16 %v134
    %v749 = vunpack.c.h.b16 %v134
    %v750 = vunpack.c.l.b16 %v135
    %v751 = vunpack.c.h.b16 %v135
    %v752 = vunpack.c.l.b16 %v136
    %v753 = vunpack.c.h.b16 %v136
    %v754 = vunpack.c.l.b16 %v137
    %v755 = vunpack.c.h.b16 %v137
    %v756 = vunpack.c.l.b16 %v138
    %v757 = vunpack.c.h.b16 %v138
    %v758 = vunpack.c.l.b16 %v139
    %v759 = vunpack.c.h.b16 %v139
    %v760 = vunpack.c.l.b16 %v140
    %v761 = vunpack.c.h.b16 %v140
    %v762 = vunpack.c.l.b16 %v141
    %v763 = vunpack.c.h.b16 %v141
    %v764 = vunpack.c.l.b16 %v142
    %v765 = vunpack.c.h.b16 %v142
    %v766 = vunpack.c.l.b16 %v143
    %v767 = vunpack.c.h.b16 %v143
    %v768 = vunpack.c.l.b16 %v144
    %v769 = vunpack.c.h.b16 %v144
    %v770 = vunpack.c.l.b16 %v145
    %v771 = vunpack.c.h.b16 %v145
    %v772 = vunpack.c.l.b16 %v146
    %v773 = vunpack.c.h.b16 %v146
    %v774 = vunpack.c.l.b16 %v147
    %v775 = vunpack.c.h.b16 %v147
    %v776 = vunpack.c.l.b16 %v148
    %v777 = vunpack.c.h.b16 %v148
    %v778 = vunpack.c.l.b16 %v149
    %v779 = vunpack.c.h.b16 %v149
    %v780 = vunpack.c.l.b16 %v150
    %v781 = vunpack.c.h.b16 %v150
    %v782 = vunpack.c.l.b16 %v151
    %v783 = vunpack.c.h.b16 %v151
    %v784 = vunpack.c.l.b16 %v152
    %v785 = vunpack.c.h.b16 %v152
    %v786 = vunpack.c.l.b16 %v153
    %v787 = vunpack.c.h.b16 %v153
    %v788 = vunpack.c.l.b16 %v154
    %v789 = vunpack.c.h.b16 %v154
    %v790 = vunpack.c.l.b16 %v155
    %v791 = vunpack.c.h.b16 %v155
    %v792 = vunpack.c.l.b16 %v156
    %v793 = vunpack.c.h.b16 %v156
    %v794 = vunpack.c.l.b16 %v157
    %v795 = vunpack.c.h.b16 %v157
    %v796 = vunpack.c.l.b16 %v158
    %v797 = vunpack.c.h.b16 %v158
    %v798 = vunpack.c.l.b16 %v159
    %v799 = vunpack.c.h.b16 %v159
    %v800 = vunpack.c.l.b16 %v160
    %v801 = vunpack.c.h.b16 %v160
    %v802 = vunpack.c.l.b16 %v161
    %v803 = vunpack.c.h.b16 %v161
    %v804 = vunpack.c.l.b16 %v162
    %v805 = vunpack.c.h.b16 %v162
    %v806 = vunpack.c.l.b16 %v163
    %v807 = vunpack.c.h.b16 %v163
    %v808 = vunpack.c.l.b16 %v164
    %v809 = vunpack.c.h.b16 %v164
    %v810 = vunpack.c.l.b16 %v165
    %v811 = vunpack.c.h.b16 %v165
    %v812 = vunpack.c.l.b16 %v166
    %v813 = vunpack.c.h.b16 %v166
    %v814 = vunpack.c.l.b16 %v167
    %v815 = vunpack.c.h.b16 %v167
    %v816 = vunpack.c.l.b16 %v168
    %v817 = vunpack.c.h.b16 %v168
    %v818 = vunpack.c.l.b16 %v169
    %v819 = vunpack.c.h.b16 %v169
    %v820 = vunpack.c.l.b16 %v170
    %v821 = vunpack.c.h.b16 %v170
    %v822 = vunpack.c.l.b16 %v171
    %v823 = vunpack.c.h.b16 %v171
    %v824 = vunpack.c.l.b16 %v172
    %v825 = vunpack.c.h.b16 %v172
    %v826 = vunpack.c.l.b16 %v173
    %v827 = vunpack.c.h.b16 %v173
    %v828 = vunpack.c.l.b16 %v174
    %v829 = vunpack.c.h.b16 %v174
    %v830 = vunpack.c.l.b16 %v175
    %v831 = vunpack.c.h.b16 %v175
    %v832 = vunpack.c.l.b16 %v176
    %v833 = vunpack.c.h.b16 %v176
    %v834 = vunpack.c.l.b16 %v177
    %v835 = vunpack.c.h.b16 %v177
    %v836 = vunpack.c.l.b16 %v178
    %v837 = vunpack.c.h.b16 %v178
    %v838 = vunpack.c.l.b16 %v179
    %v839 = vunpack.c.h.b16 %v179
    %v840 = vunpack.c.l.b16 %v180
    %v841 = vunpack.c.h.b16 %v180
    %v842 = vunpack.c.l.b16 %v181
    %v843 = vunpack.c.h.b16 %v181
    %v844 = vunpack.c.l.b16 %v182
    %v845 = vunpack.c.h.b16 %v182
    %v846 = vunpack.c.l.b16 %v183
    %v847 = vunpack.c.h.b16 %v183
    %v848 = vunpack.c.l.b16 %v184
    %v849 = vunpack.c.h.b16 %v184
    %v850 = vunpack.c.l.b16 %v185
    %v851 = vunpack.c.h.b16 %v185
    %v852 = vunpack.c.l.b16 %v186
    %v853 = vunpack.c.h.b16 %v186
    %v854 = vunpack.c.l.b16 %v187
    %v855 = vunpack.c.h.b16 %v187
    %v856 = vunpack.c.l.b16 %v188
    %v857 = vunpack.c.h.b16 %v188
    %v858 = vunpack.c.l.b16 %v189
    %v859 = vunpack.c.h.b16 %v189
    %v860 = vunpack.c.l.b16 %v190
    %v861 = vunpack.c.h.b16 %v190
    %v862 = vunpack.c.l.b16 %v191
    %v863 = vunpack.c.h.b16 %v191
    %v864 = vunpack.c.l.b16 %v192
    %v865 = vunpack.c.h.b16 %v192
    %v866 = vunpack.c.l.b16 %v193
    %v867 = vunpack.c.h.b16 %v193
    %v868 = vunpack.c.l.b16 %v194
    %v869 = vunpack.c.h.b16 %v194
    %v870 = vunpack.c.l.b16 %v195
    %v871 = vunpack.c.h.b16 %v195
    %v872 = vunpack.c.l.b16 %v196
    %v873 = vunpack.c.h.b16 %v196
    %v874 = vunpack.c.l.b16 %v197
    %v875 = vunpack.c.h.b16 %v197
    %v876 = vunpack.c.l.b16 %v198
    %v877 = vunpack.c.h.b16 %v198
    %v878 = vunpack.c.l.b16 %v199
    %v879 = vunpack.c.h.b16 %v199
    %v880 = vunpack.c.l.b16 %v200
    %v881 = vunpack.c.h.b16 %v200
    %v882 = vunpack.c.l.b16 %v201
    %v883 = vunpack.c.h.b16 %v201
    %v884 = vunpack.c.l.b16 %v202
    %v885 = vunpack.c.h.b16 %v202
    %v886 = vunpack.c.l.b16 %v203
    %v887 = vunpack.c.h.b16 %v203
    %v888 = vunpack.c.l.b16 %v204
    %v889 = vunpack.c.h.b16 %v204
    %v890 = vunpack.c.l.b16 %v205
    %v891 = vunpack.c.h.b16 %v205
    %v892 = vunpack.c.l.b16 %v206
    %v893 = vunpack.c.h.b16 %v206
    %v894 = vunpack.c.l.b16 %v207
    %v895 = vunpack.c.h.b16 %v207
    %v896 = vunpack.c.l.b16 %v208
    %v897 = vunpack.c.h.b16 %v208
    %v898 = vunpack.c.l.b16 %v209
    %v899 = vunpack.c.h.b16 %v209
    %v900 = vunpack.c.l.b16 %v210
    %v901 = vunpack.c.h.b16 %v210
    %v902 = vunpack.c.l.b16 %v211
    %v903 = vunpack.c.h.b16 %v211
    %v904 = vunpack.c.l.b16 %v212
    %v905 = vunpack.c.h.b16 %v212
    %v906 = vunpack.c.l.b16 %v213
    %v907 = vunpack.c.h.b16 %v213
    %v908 = vunpack.c.l.b16 %v214
    %v909 = vunpack.c.h.b16 %v214
    %v910 = vunpack.c.l.b16 %v215
    %v911 = vunpack.c.h.b16 %v215
    %v912 = vunpack.c.l.b16 %v216
    %v913 = vunpack.c.h.b16 %v216
    %v914 = vunpack.c.l.b16 %v217
    %v915 = vunpack.c.h.b16 %v217
    %v916 = vunpack.c.l.b16 %v218
    %v917 = vunpack.c.h.b16 %v218
    %v918 = vunpack.c.l.b16 %v219
    %v919 = vunpack.c.h.b16 %v219
    %v920 = vunpack.c.l.b16 %v220
    %v921 = vunpack.c.h.b16 %v220
    %v922 = vunpack.c.l.b16 %v221
    %v923 = vunpack.c.h.b16 %v221
    %v924 = vunpack.c.l.b16 %v222
    %v925 = vunpack.c.h.b16 %v222
    %v926 = vunpack.c.l.b16 %v223
    %v927 = vunpack.c.h.b16 %v223
    %v928 = vunpack.c.l.b16 %v224
    %v929 = vunpack.c.h.b16 %v224
    %v930 = vunpack.c.l.b16 %v225
    %v931 = vunpack.c.h.b16 %v225
    %v932 = vunpack.c.l.b16 %v226
    %v933 = vunpack.c.h.b16 %v226
    %v934 = vunpack.c.l.b16 %v227
    %v935 = vunpack.c.h.b16 %v227
    %v936 = vunpack.c.l.b16 %v228
    %v937 = vunpack.c.h.b16 %v228
    %v938 = vunpack.c.l.b16 %v229
    %v939 = vunpack.c.h.b16 %v229
    %v940 = vunpack.c.l.b16 %v230
    %v941 = vunpack.c.h.b16 %v230
    %v942 = vunpack.c.l.b16 %v231
    %v943 = vunpack.c.h.b16 %v231
    %v944 = vunpack.c.l.b16 %v232
    %v945 = vunpack.c.h.b16 %v232
    %v946 = vunpack.c.l.b16 %v233
    %v947 = vunpack.c.h.b16 %v233
    %v948 = vunpack.c.l.b16 %v234
    %v949 = vunpack.c.h.b16 %v234
    %v950 = vunpack.c.l.b16 %v235
    %v951 = vunpack.c.h.b16 %v235
    %v952 = vunpack.c.l.b16 %v236
    %v953 = vunpack.c.h.b16 %v236
    %v954 = vunpack.c.l.b16 %v237
    %v955 = vunpack.c.h.b16 %v237
    %v956 = vunpack.c.l.b16 %v238
    %v957 = vunpack.c.h.b16 %v238
    %v958 = vunpack.c.l.b16 %v239
    %v959 = vunpack.c.h.b16 %v239
    %v960 = vunpack.c.l.b16 %v240
    %v961 = vunpack.c.h.b16 %v240
    %v962 = vunpack.c.l.b16 %v241
    %v963 = vunpack.c.h.b16 %v241
    %v964 = vunpack.c.l.b16 %v242
    %v965 = vunpack.c.h.b16 %v242
    %v966 = vunpack.c.l.b16 %v243
    %v967 = vunpack.c.h.b16 %v243
    %v968 = vunpack.c.l.b16 %v244
    %v969 = vunpack.c.h.b16 %v244
    %v970 = vunpack.c.l.b16 %v245
    %v971 = vunpack.c.h.b16 %v245
    %v972 = vunpack.c.l.b16 %v246
    %v973 = vunpack.c.h.b16 %v246
    %v974 = vunpack.c.l.b16 %v247
    %v975 = vunpack.c.h.b16 %v247
    %v976 = vunpack.c.l.b16 %v248
    %v977 = vunpack.c.h.b16 %v248
    %v978 = vunpack.c.l.b16 %v249
    %v979 = vunpack.c.h.b16 %v249
    %v980 = vunpack.c.l.b16 %v250
    %v981 = vunpack.c.h.b16 %v250
    %v982 = vunpack.c.l.b16 %v251
    %v983 = vunpack.c.h.b16 %v251
    %v984 = vunpack.c.l.b16 %v252
    %v985 = vunpack.c.h.b16 %v252
    %v986 = vunpack.c.l.b16 %v253
    %v987 = vunpack.c.h.b16 %v253
    %v988 = vunpack.c.l.b16 %v254
    %v989 = vunpack.c.h.b16 %v254
    %v990 = vunpack.c.l.b16 %v255
    %v991 = vunpack.c.h.b16 %v255
    %v992 = vunpack.c.l.b16 %v256
    %v993 = vunpack.c.h.b16 %v256
    %v994 = vunpack.c.l.b16 %v257
    %v995 = vunpack.c.h.b16 %v257
    %v996 = vunpack.c.l.b16 %v258
    %v997 = vunpack.c.h.b16 %v258
    %v998 = vunpack.c.l.b16 %v259
    %v999 = vunpack.c.h.b16 %v259
    %v1000 = vunpack.c.l.b16 %v260
    %v1001 = vunpack.c.h.b16 %v260
    %v1002 = vunpack.c.l.b16 %v261
    %v1003 = vunpack.c.h.b16 %v261
    %v1004 = vunpack.c.l.b16 %v262
    %v1005 = vunpack.c.h.b16 %v262
    %v1006 = vunpack.c.l.b16 %v263
    %v1007 = vunpack.c.h.b16 %v263
    %v1008 = vunpack.c.l.b16 %v264
    %v1009 = vunpack.c.h.b16 %v264
    %v1010 = vunpack.c.l.b16 %v265
    %v1011 = vunpack.c.h.b16 %v265
    %v1012 = vunpack.c.l.b16 %v266
    %v1013 = vunpack.c.h.b16 %v266
    %v1014 = vunpack.c.l.b16 %v267
    %v1015 = vunpack.c.h.b16 %v267
    %v1016 = vunpack.c.l.b16 %v268
    %v1017 = vunpack.c.h.b16 %v268
    %v1018 = vunpack.c.l.b16 %v269
    %v1019 = vunpack.c.h.b16 %v269
    %v1020 = vunpack.c.l.b16 %v270
    %v1021 = vunpack.c.h.b16 %v270
    %v1022 = vunpack.c.l.b16 %v271
    %v1023 = vunpack.c.h.b16 %v271
    %v1024 = vunpack.c.l.b16 %v272
    %v1025 = vunpack.c.h.b16 %v272
    %v1026 = vunpack.c.l.b16 %v273
    %v1027 = vunpack.c.h.b16 %v273
    %v1028 = vunpack.c.l.b16 %v274
    %v1029 = vunpack.c.h.b16 %v274
    %v1030 = vunpack.c.l.b16 %v275
    %v1031 = vunpack.c.h.b16 %v275
    %v1032 = vunpack.c.l.b16 %v276
    %v1033 = vunpack.c.h.b16 %v276
    %v1034 = vunpack.c.l.b16 %v277
    %v1035 = vunpack.c.h.b16 %v277
    %v1036 = vunpack.c.l.b16 %v278
    %v1037 = vunpack.c.h.b16 %v278
    %v1038 = vunpack.c.l.b16 %v279
    %v1039 = vunpack.c.h.b16 %v279
    %v1040 = vunpack.c.l.b16 %v280
    %v1041 = vunpack.c.h.b16 %v280
    %v1042 = vunpack.c.l.b16 %v281
    %v1043 = vunpack.c.h.b16 %v281
    %v1044 = vunpack.c.l.b16 %v282
    %v1045 = vunpack.c.h.b16 %v282
    %v1046 = vunpack.c.l.b16 %v283
    %v1047 = vunpack.c.h.b16 %v283
    %v1048 = vunpack.c.l.b16 %v284
    %v1049 = vunpack.c.h.b16 %v284
    %v1050 = vunpack.c.l.b16 %v285
    %v1051 = vunpack.c.h.b16 %v285
    %v1052 = vunpack.c.l.b16 %v286
    %v1053 = vunpack.c.h.b16 %v286
    %v1054 = vunpack.c.l.b16 %v287
    %v1055 = vunpack.c.h.b16 %v287
    %v1056 = vunpack.c.l.b16 %v288
    %v1057 = vunpack.c.h.b16 %v288
    %v1058 = vunpack.c.l.b16 %v289
    %v1059 = vunpack.c.h.b16 %v289
    %v1060 = vunpack.c.l.b16 %v290
    %v1061 = vunpack.c.h.b16 %v290
    %v1062 = vunpack.c.l.b16 %v291
    %v1063 = vunpack.c.h.b16 %v291
    %v1064 = vunpack.c.l.b16 %v292
    %v1065 = vunpack.c.h.b16 %v292
    %v1066 = vunpack.c.l.b16 %v293
    %v1067 = vunpack.c.h.b16 %v293
    %v1068 = vunpack.c.l.b16 %v294
    %v1069 = vunpack.c.h.b16 %v294
    %v1070 = vunpack.c.l.b16 %v295
    %v1071 = vunpack.c.h.b16 %v295
    %v1072 = vunpack.c.l.b16 %v296
    %v1073 = vunpack.c.h.b16 %v296
    %v1074 = vunpack.c.l.b16 %v297
    %v1075 = vunpack.c.h.b16 %v297
    %v1076 = vunpack.c.l.b16 %v298
    %v1077 = vunpack.c.h.b16 %v298
    %v1078 = vunpack.c.l.b16 %v299
    %v1079 = vunpack.c.h.b16 %v299
    %v1080 = vunpack.c.l.b16 %v300
    %v1081 = vunpack.c.h.b16 %v300
    %v1082 = vunpack.c.l.b16 %v301
    %v1083 = vunpack.c.h.b16 %v301
    %v1084 = vunpack.c.l.b16 %v302
    %v1085 = vunpack.c.h.b16 %v302
    %v1086 = vunpack.c.l.b16 %v303
    %v1087 = vunpack.c.h.b16 %v303
    %v1088 = vunpack.c.l.b16 %v304
    %v1089 = vunpack.c.h.b16 %v304
    %v1090 = vunpack.c.l.b16 %v305
    %v1091 = vunpack.c.h.b16 %v305
    %v1092 = vunpack.c.l.b16 %v306
    %v1093 = vunpack.c.h.b16 %v306
    %v1094 = vunpack.c.l.b16 %v307
    %v1095 = vunpack.c.h.b16 %v307
    %v1096 = vunpack.c.l.b16 %v308
    %v1097 = vunpack.c.h.b16 %v308
    %v1098 = vunpack.c.l.b16 %v309
    %v1099 = vunpack.c.h.b16 %v309
    %v1100 = vunpack.c.l.b16 %v310
    %v1101 = vunpack.c.h.b16 %v310
    %v1102 = vunpack.c.l.b16 %v311
    %v1103 = vunpack.c.h.b16 %v311
    %v1104 = vunpack.c.l.b16 %v312
    %v1105 = vunpack.c.h.b16 %v312
    %v1106 = vunpack.c.l.b16 %v313
    %v1107 = vunpack.c.h.b16 %v313
    %v1108 = vunpack.c.l.b16 %v314
    %v1109 = vunpack.c.h.b16 %v314
    %v1110 = vunpack.c.l.b16 %v315
    %v1111 = vunpack.c.h.b16 %v315
    %v1112 = vunpack.c.l.b16 %v316
    %v1113 = vunpack.c.h.b16 %v316
    %v1114 = vunpack.c.l.b16 %v317
    %v1115 = vunpack.c.h.b16 %v317
    %v1116 = vunpack.c.l.b16 %v318
    %v1117 = vunpack.c.h.b16 %v318
    %v1118 = vunpack.c.l.b16 %v319
    %v1119 = vunpack.c.h.b16 %v319
    %v1120 = vunpack.c.l.b16 %v320
    %v1121 = vunpack.c.h.b16 %v320
    %v1122 = vunpack.c.l.b16 %v321
    %v1123 = vunpack.c.h.b16 %v321
    %v1124 = vunpack.c.l.b16 %v322
    %v1125 = vunpack.c.h.b16 %v322
    %v1126 = vunpack.c.l.b16 %v323
    %v1127 = vunpack.c.h.b16 %v323
    %v1128 = vunpack.c.l.b16 %v324
    %v1129 = vunpack.c.h.b16 %v324
    %v1130 = vunpack.c.l.b16 %v325
    %v1131 = vunpack.c.h.b16 %v325
    %v1132 = vunpack.c.l.b16 %v326
    %v1133 = vunpack.c.h.b16 %v326
    %v1134 = vunpack.c.l.b16 %v327
    %v1135 = vunpack.c.h.b16 %v327
    %v1136 = vunpack.c.l.b16 %v328
    %v1137 = vunpack.c.h.b16 %v328
    %v1138 = vunpack.c.l.b16 %v329
    %v1139 = vunpack.c.h.b16 %v329
    %v1140 = vunpack.c.l.b16 %v330
    %v1141 = vunpack.c.h.b16 %v330
    %v1142 = vunpack.c.l.b16 %v331
    %v1143 = vunpack.c.h.b16 %v331
    %v1144 = vunpack.c.l.b16 %v332
    %v1145 = vunpack.c.h.b16 %v332
    %v1146 = vunpack.c.l.b16 %v333
    %v1147 = vunpack.c.h.b16 %v333
    %v1148 = vunpack.c.l.b16 %v334
    %v1149 = vunpack.c.h.b16 %v334
    %v1150 = vunpack.c.l.b16 %v335
    %v1151 = vunpack.c.h.b16 %v335
    %v1152 = vunpack.c.l.b16 %v336
    %v1153 = vunpack.c.h.b16 %v336
    %v1154 = vunpack.c.l.b16 %v337
    %v1155 = vunpack.c.h.b16 %v337
    %v1156 = vunpack.c.l.b16 %v338
    %v1157 = vunpack.c.h.b16 %v338
    %v1158 = vunpack.c.l.b16 %v339
    %v1159 = vunpack.c.h.b16 %v339
    %v1160 = vunpack.c.l.b16 %v340
    %v1161 = vunpack.c.h.b16 %v340
    %v1162 = vunpack.c.l.b16 %v341
    %v1163 = vunpack.c.h.b16 %v341
    %v1164 = vunpack.c.l.b16 %v342
    %v1165 = vunpack.c.h.b16 %v342
    %v1166 = vunpack.c.l.b16 %v343
    %v1167 = vunpack.c.h.b16 %v343
    %v1168 = vunpack.c.l.b16 %v344
    %v1169 = vunpack.c.h.b16 %v344
    %v1170 = vunpack.c.l.b16 %v345
    %v1171 = vunpack.c.h.b16 %v345
    %v1172 = vunpack.c.l.b16 %v346
    %v1173 = vunpack.c.h.b16 %v346
    %v1174 = vunpack.c.l.b16 %v347
    %v1175 = vunpack.c.h.b16 %v347
    %v1176 = vunpack.c.l.b16 %v348
    %v1177 = vunpack.c.h.b16 %v348
    %v1178 = vunpack.c.l.b16 %v349
    %v1179 = vunpack.c.h.b16 %v349
    %v1180 = vunpack.c.l.b16 %v350
    %v1181 = vunpack.c.h.b16 %v350
    %v1182 = vunpack.c.l.b16 %v351
    %v1183 = vunpack.c.h.b16 %v351
    %v1184 = vunpack.c.l.b16 %v352
    %v1185 = vunpack.c.h.b16 %v352
    %v1186 = vunpack.c.l.b16 %v353
    %v1187 = vunpack.c.h.b16 %v353
    %v1188 = vunpack.c.l.b16 %v354
    %v1189 = vunpack.c.h.b16 %v354
    %v1190 = vunpack.c.l.b16 %v355
    %v1191 = vunpack.c.h.b16 %v355
    %v1192 = vunpack.c.l.b16 %v356
    %v1193 = vunpack.c.h.b16 %v356
    %v1194 = vunpack.c.l.b16 %v357
    %v1195 = vunpack.c.h.b16 %v357
    %v1196 = vunpack.c.l.b16 %v358
    %v1197 = vunpack.c.h.b16 %v358
    %v1198 = vunpack.c.l.b16 %v359
    %v1199 = vunpack.c.h.b16 %v359
    %v1200 = vunpack.c.l.b16 %v360
    %v1201 = vunpack.c.h.b16 %v360
    %v1202 = vunpack.c.l.b16 %v361
    %v1203 = vunpack.c.h.b16 %v361
    %v1204 = vunpack.c.l.b16 %v362
    %v1205 = vunpack.c.h.b16 %v362
    %v1206 = vunpack.c.l.b16 %v363
    %v1207 = vunpack.c.h.b16 %v363
    %v1208 = vunpack.c.l.b16 %v364
    %v1209 = vunpack.c.h.b16 %v364
    %v1210 = vunpack.c.l.b16 %v365
    %v1211 = vunpack.c.h.b16 %v365
    %v1212 = vunpack.c.l.b16 %v366
    %v1213 = vunpack.c.h.b16 %v366
    %v1214 = vunpack.c.l.b16 %v367
    %v1215 = vunpack.c.h.b16 %v367
    %v1216 = vunpack.c.l.b16 %v368
    %v1217 = vunpack.c.h.b16 %v368
    %v1218 = vunpack.c.l.b16 %v369
    %v1219 = vunpack.c.h.b16 %v369
    %v1220 = vunpack.c.l.b16 %v370
    %v1221 = vunpack.c.h.b16 %v370
    %v1222 = vunpack.c.l.b16 %v371
    %v1223 = vunpack.c.h.b16 %v371
    %v1224 = vunpack.c.l.b16 %v372
    %v1225 = vunpack.c.h.b16 %v372
    %v1226 = vunpack.c.l.b16 %v373
    %v1227 = vunpack.c.h.b16 %v373
    %v1228 = vunpack.c.l.b16 %v374
    %v1229 = vunpack.c.h.b16 %v374
    %v1230 = vunpack.c.l.b16 %v375
    %v1231 = vunpack.c.h.b16 %v375
    %v1232 = vunpack.c.l.b16 %v376
    %v1233 = vunpack.c.h.b16 %v376
    %v1234 = vunpack.c.l.b16 %v377
    %v1235 = vunpack.c.h.b16 %v377
    %v1236 = vunpack.c.l.b16 %v378
    %v1237 = vunpack.c.h.b16 %v378
    %v1238 = vunpack.c.l.b16 %v379
    %v1239 = vunpack.c.h.b16 %v379
    %v1240 = vunpack.c.l.b16 %v380
    %v1241 = vunpack.c.h.b16 %v380
    %v1242 = vunpack.c.l.b16 %v381
    %v1243 = vunpack.c.h.b16 %v381
    %v1244 = vpack.c.b16 %v688, %v684
    %v1245 = vpack.c.b16 %v689, %v685
    %v1246 = vpack.c.b16 %v690, %v686
    %v1247 = vpack.c.b16 %v691, %v687
    %v1248 = vpack.c.b16 %v696, %v692
    %v1249 = vpack.c.b16 %v697, %v693
    %v1250 = vpack.c.b16 %v698, %v694
    %v1251 = vpack.c.b16 %v699, %v695
    %v1252 = vpack.c.b16 %v704, %v700
    %v1253 = vpack.c.b16 %v705, %v701
    %v1254 = vpack.c.b16 %v706, %v702
    %v1255 = vpack.c.b16 %v707, %v703
    %v1256 = vpack.c.b16 %v712, %v708
    %v1257 = vpack.c.b16 %v713, %v709
    %v1258 = vpack.c.b16 %v714, %v710
    %v1259 = vpack.c.b16 %v715, %v711
    %v1260 = vpack.c.b16 %v720, %v716
    %v1261 = vpack.c.b16 %v721, %v717
    %v1262 = vpack.c.b16 %v722, %v718
    %v1263 = vpack.c.b16 %v723, %v719
    %v1264 = vpack.c.b16 %v728, %v724
    %v1265 = vpack.c.b16 %v729, %v725
    %v1266 = vpack.c.b16 %v730, %v726
    %v1267 = vpack.c.b16 %v731, %v727
    %v1268 = vpack.c.b16 %v736, %v732
    %v1269 = vpack.c.b16 %v737, %v733
    %v1270 = vpack.c.b16 %v738, %v734
    %v1271 = vpack.c.b16 %v739, %v735
    %v1272 = vpack.c.b16 %v744, %v740
    %v1273 = vpack.c.b16 %v745, %v741
    %v1274 = vpack.c.b16 %v746, %v742
    %v1275 = vpack.c.b16 %v747, %v743
    %v1276 = vpack.c.b16 %v752, %v748
    %v1277 = vpack.c.b16 %v753, %v749
    %v1278 = vpack.c.b16 %v754, %v750
    %v1279 = vpack.c.b16 %v755, %v751
    %v1280 = vpack.c.b16 %v760, %v756
    %v1281 = vpack.c.b16 %v761, %v757
    %v1282 = vpack.c.b16 %v762, %v758
    %v1283 = vpack.c.b16 %v763, %v759
    %v1284 = vpack.c.b16 %v768, %v764
    %v1285 = vpack.c.b16 %v769, %v765
    %v1286 = vpack.c.b16 %v770, %v766
    %v1287 = vpack.c.b16 %v771, %v767
    %v1288 = vpack.c.b16 %v776, %v772
    %v1289 = vpack.c.b16 %v777, %v773
    %v1290 = vpack.c.b16 %v778, %v774
    %v1291 = vpack.c.b16 %v779, %v775
    %v1292 = vpack.c.b16 %v784, %v780
    %v1293 = vpack.c.b16 %v785, %v781
    %v1294 = vpack.c.b16 %v786, %v782
    %v1295 = vpack.c.b16 %v787, %v783
    %v1296 = vpack.c.b16 %v792, %v788
    %v1297 = vpack.c.b16 %v793, %v789
    %v1298 = vpack.c.b16 %v794, %v790
    %v1299 = vpack.c.b16 %v795, %v791
    %v1300 = vpack.c.b16 %v800, %v796
    %v1301 = vpack.c.b16 %v801, %v797
    %v1302 = vpack.c.b16 %v802, %v798
    %v1303 = vpack.c.b16 %v803, %v799
    %v1304 = vpack.c.b16 %v808, %v804
    %v1305 = vpack.c.b16 %v809, %v805
    %v1306 = vpack.c.b16 %v810, %v806
    %v1307 = vpack.c.b16 %v811, %v807
    %v1308 = vpack.c.b16 %v816, %v812
    %v1309 = vpack.c.b16 %v817, %v813
    %v1310 = vpack.c.b16 %v818, %v814
    %v1311 = vpack.c.b16 %v819, %v815
    %v1312 = vpack.c.b16 %v824, %v820
    %v1313 = vpack.c.b16 %v825, %v821
    %v1314 = vpack.c.b16 %v826, %v822
    %v1315 = vpack.c.b16 %v827, %v823
    %v1316 = vpack.c.b16 %v832, %v828
    %v1317 = vpack.c.b16 %v833, %v829
    %v1318 = vpack.c.b16 %v834, %v830
    %v1319 = vpack.c.b16 %v835, %v831
    %v1320 = vpack.c.b16 %v840, %v836
    %v1321 = vpack.c.b16 %v841, %v837
    %v1322 = vpack.c.b16 %v842, %v838
    %v1323 = vpack.c.b16 %v843, %v839
    %v1324 = vpack.c.b16 %v848, %v844
    %v1325 = vpack.c.b16 %v849, %v845
    %v1326 = vpack.c.b16 %v850, %v846
    %v1327 = vpack.c.b16 %v851, %v847
    %v1328 = vpack.c.b16 %v856, %v852
    %v1329 = vpack.c.b16 %v857, %v853
    %v1330 = vpack.c.b16 %v858, %v854
    %v1331 = vpack.c.b16 %v859, %v855
    %v1332 = vpack.c.b16 %v864, %v860
    %v1333 = vpack.c.b16 %v865, %v861
    %v1334 = vpack.c.b16 %v866, %v862
    %v1335 = vpack.c.b16 %v867, %v863
    %v1336 = vpack.c.b16 %v872, %v868
    %v1337 = vpack.c.b16 %v873, %v869
    %v1338 = vpack.c.b16 %v874, %v870
    %v1339 = vpack.c.b16 %v875, %v871
    %v1340 = vpack.c.b16 %v880, %v876
    %v1341 = vpack.c.b16 %v881, %v877
    %v1342 = vpack.c.b16 %v882, %v878
    %v1343 = vpack.c.b16 %v883, %v879
    %v1344 = vpack.c.b16 %v888, %v884
    %v1345 = vpack.c.b16 %v889, %v885
    %v1346 = vpack.c.b16 %v890, %v886
    %v1347 = vpack.c.b16 %v891, %v887
    %v1348 = vpack.c.b16 %v896, %v892
    %v1349 = vpack.c.b16 %v897, %v893
    %v1350 = vpack.c.b16 %v898, %v894
    %v1351 = vpack.c.b16 %v899, %v895
    %v1352 = vpack.c.b16 %v904, %v900
    %v1353 = vpack.c.b16 %v905, %v901
    %v1354 = vpack.c.b16 %v906, %v902
    %v1355 = vpack.c.b16 %v907, %v903
    %v1356 = vpack.c.b16 %v912, %v908
    %v1357 = vpack.c.b16 %v913, %v909
    %v1358 = vpack.c.b16 %v914, %v910
    %v1359 = vpack.c.b16 %v915, %v911
    %v1360 = vpack.c.b16 %v920, %v916
    %v1361 = vpack.c.b16 %v921, %v917
    %v1362 = vpack.c.b16 %v922, %v918
    %v1363 = vpack.c.b16 %v923, %v919
    %v1364 = vpack.c.b16 %v928, %v924
    %v1365 = vpack.c.b16 %v929, %v925
    %v1366 = vpack.c.b16 %v930, %v926
    %v1367 = vpack.c.b16 %v931, %v927
    %v1368 = vpack.c.b16 %v936, %v932
    %v1369 = vpack.c.b16 %v937, %v933
    %v1370 = vpack.c.b16 %v938, %v934
    %v1371 = vpack.c.b16 %v939, %v935
    %v1372 = vpack.c.b16 %v944, %v940
    %v1373 = vpack.c.b16 %v945, %v941
    %v1374 = vpack.c.b16 %v946, %v942
    %v1375 = vpack.c.b16 %v947, %v943
    %v1376 = vpack.c.b16 %v952, %v948
    %v1377 = vpack.c.b16 %v953, %v949
    %v1378 = vpack.c.b16 %v954, %v950
    %v1379 = vpack.c.b16 %v955, %v951
    %v1380 = vpack.c.b16 %v960, %v956
    %v1381 = vpack.c.b16 %v961, %v957
    %v1382 = vpack.c.b16 %v962, %v958
    %v1383 = vpack.c.b16 %v963, %v959
    %v1384 = vpack.c.b16 %v968, %v964
    %v1385 = vpack.c.b16 %v969, %v965
    %v1386 = vpack.c.b16 %v970, %v966
    %v1387 = vpack.c.b16 %v971, %v967
    %v1388 = vpack.c.b16 %v976, %v972
    %v1389 = vpack.c.b16 %v977, %v973
    %v1390 = vpack.c.b16 %v978, %v974
    %v1391 = vpack.c.b16 %v979, %v975
    %v1392 = vpack.c.b16 %v984, %v980
    %v1393 = vpack.c.b16 %v985, %v981
    %v1394 = vpack.c.b16 %v986, %v982
    %v1395 = vpack.c.b16 %v987, %v983
    %v1396 = vpack.c.b16 %v992, %v988
    %v1397 = vpack.c.b16 %v993, %v989
    %v1398 = vpack.c.b16 %v994, %v990
    %v1399 = vpack.c.b16 %v995, %v991
    %v1400 = vpack.c.b16 %v1000, %v996
    %v1401 = vpack.c.b16 %v1001, %v997
    %v1402 = vpack.c.b16 %v1002, %v998
    %v1403 = vpack.c.b16 %v1003, %v999
    %v1404 = vpack.c.b16 %v1008, %v1004
    %v1405 = vpack.c.b16 %v1009, %v1005
    %v1406 = vpack.c.b16 %v1010, %v1006
    %v1407 = vpack.c.b16 %v1011, %v1007
    %v1408 = vpack.c.b16 %v1016, %v1012
    %v1409 = vpack.c.b16 %v1017, %v1013
    %v1410 = vpack.c.b16 %v1018, %v1014
    %v1411 = vpack.c.b16 %v1019, %v1015
    %v1412 = vpack.c.b16 %v1024, %v1020
    %v1413 = vpack.c.b16 %v1025, %v1021
    %v1414 = vpack.c.b16 %v1026, %v1022
    %v1415 = vpack.c.b16 %v1027, %v1023
    %v1416 = vpack.c.b16 %v1032, %v1028
    %v1417 = vpack.c.b16 %v1033, %v1029
    %v1418 = vpack.c.b16 %v1034, %v1030
    %v1419 = vpack.c.b16 %v1035, %v1031
    %v1420 = vpack.c.b16 %v1040, %v1036
    %v1421 = vpack.c.b16 %v1041, %v1037
    %v1422 = vpack.c.b16 %v1042, %v1038
    %v1423 = vpack.c.b16 %v1043, %v1039
    %v1424 = vpack.c.b16 %v1048, %v1044
    %v1425 = vpack.c.b16 %v1049, %v1045
    %v1426 = vpack.c.b16 %v1050, %v1046
    %v1427 = vpack.c.b16 %v1051, %v1047
    %v1428 = vpack.c.b16 %v1056, %v1052
    %v1429 = vpack.c.b16 %v1057, %v1053
    %v1430 = vpack.c.b16 %v1058, %v1054
    %v1431 = vpack.c.b16 %v1059, %v1055
    %v1432 = vpack.c.b16 %v1064, %v1060
    %v1433 = vpack.c.b16 %v1065, %v1061
    %v1434 = vpack.c.b16 %v1066, %v1062
    %v1435 = vpack.c.b16 %v1067, %v1063
    %v1436 = vpack.c.b16 %v1072, %v1068
    %v1437 = vpack.c.b16 %v1073, %v1069
    %v1438 = vpack.c.b16 %v1074, %v1070
    %v1439 = vpack.c.b16 %v1075, %v1071
    %v1440 = vpack.c.b16 %v1080, %v1076
    %v1441 = vpack.c.b16 %v1081, %v1077
    %v1442 = vpack.c.b16 %v1082, %v1078
    %v1443 = vpack.c.b16 %v1083, %v1079
    %v1444 = vpack.c.b16 %v1088, %v1084
    %v1445 = vpack.c.b16 %v1089, %v1085
    %v1446 = vpack.c.b16 %v1090, %v1086
    %v1447 = vpack.c.b16 %v1091, %v1087
    %v1448 = vpack.c.b16 %v1096, %v1092
    %v1449 = vpack.c.b16 %v1097, %v1093
    %v1450 = vpack.c.b16 %v1098, %v1094
    %v1451 = vpack.c.b16 %v1099, %v1095
    %v1452 = vpack.c.b16 %v1104, %v1100
    %v1453 = vpack.c.b16 %v1105, %v1101
    %v1454 = vpack.c.b16 %v1106, %v1102
    %v1455 = vpack.c.b16 %v1107, %v1103
    %v1456 = vpack.c.b16 %v1112, %v1108
    %v1457 = vpack.c.b16 %v1113, %v1109
    %v1458 = vpack.c.b16 %v1114, %v1110
    %v1459 = vpack.c.b16 %v1115, %v1111
    %v1460 = vpack.c.b16 %v1120, %v1116
    %v1461 = vpack.c.b16 %v1121, %v1117
    %v1462 = vpack.c.b16 %v1122, %v1118
    %v1463 = vpack.c.b16 %v1123, %v1119
    %v1464 = vpack.c.b16 %v1128, %v1124
    %v1465 = vpack.c.b16 %v1129, %v1125
    %v1466 = vpack.c.b16 %v1130, %v1126
    %v1467 = vpack.c.b16 %v1131, %v1127
    %v1468 = vpack.c.b16 %v1136, %v1132
    %v1469 = vpack.c.b16 %v1137, %v1133
    %v1470 = vpack.c.b16 %v1138, %v1134
    %v1471 = vpack.c.b16 %v1139, %v1135
    %v1472 = vpack.c.b16 %v1144, %v1140
    %v1473 = vpack.c.b16 %v1145, %v1141
    %v1474 = vpack.c.b16 %v1146, %v1142
    %v1475 = vpack.c.b16 %v1147, %v1143
    %v1476 = vpack.c.b16 %v1152, %v1148
    %v1477 = vpack.c.b16 %v1153, %v1149
    %v1478 = vpack.c.b16 %v1154, %v1150
    %v1479 = vpack.c.b16 %v1155, %v1151
    %v1480 = vpack.c.b16 %v1160, %v1156
    %v1481 = vpack.c.b16 %v1161, %v1157
    %v1482 = vpack.c.b16 %v1162, %v1158
    %v1483 = vpack.c.b16 %v1163, %v1159
    %v1484 = vpack.c.b16 %v1168, %v1164
    %v1485 = vpack.c.b16 %v1169, %v1165
    %v1486 = vpack.c.b16 %v1170, %v1166
    %v1487 = vpack.c.b16 %v1171, %v1167
    %v1488 = vpack.c.b16 %v1176, %v1172
    %v1489 = vpack.c.b16 %v1177, %v1173
    %v1490 = vpack.c.b16 %v1178, %v1174
    %v1491 = vpack.c.b16 %v1179, %v1175
    %v1492 = vpack.c.b16 %v1184, %v1180
    %v1493 = vpack.c.b16 %v1185, %v1181
    %v1494 = vpack.c.b16 %v1186, %v1182
    %v1495 = vpack.c.b16 %v1187, %v1183
    %v1496 = vpack.c.b16 %v1192, %v1188
    %v1497 = vpack.c.b16 %v1193, %v1189
    %v1498 = vpack.c.b16 %v1194, %v1190
    %v1499 = vpack.c.b16 %v1195, %v1191
    %v1500 = vpack.c.b16 %v1200, %v1196
    %v1501 = vpack.c.b16 %v1201, %v1197
    %v1502 = vpack.c.b16 %v1202, %v1198
    %v1503 = vpack.c.b16 %v1203, %v1199
    %v1504 = vpack.c.b16 %v1208, %v1204
    %v1505 = vpack.c.b16 %v1209, %v1205
    %v1506 = vpack.c.b16 %v1210, %v1206
    %v1507 = vpack.c.b16 %v1211, %v1207
    %v1508 = vpack.c.b16 %v1216, %v1212
    %v1509 = vpack.c.b16 %v1217, %v1213
    %v1510 = vpack.c.b16 %v1218, %v1214
    %v1511 = vpack.c.b16 %v1219, %v1215
    %v1512 = vpack.c.b16 %v1224, %v1220
    %v1513 = vpack.c.b16 %v1225, %v1221
    %v1514 = vpack.c.b16 %v1226, %v1222
    %v1515 = vpack.c.b16 %v1227, %v1223
    %v1516 = vpack.c.b16 %v1232, %v1228
    %v1517 = vpack.c.b16 %v1233, %v1229
    %v1518 = vpack.c.b16 %v1234, %v1230
    %v1519 = vpack.c.b16 %v1235, %v1231
    %v1520 = vpack.c.b16 %v1240, %v1236
    %v1521 = vpack.c.b16 %v1241, %v1237
    %v1522 = vpack.c.b16 %v1242, %v1238
    %v1523 = vpack.c.b16 %v1243, %v1239
    %vm1804 = vcmask 785408
    %v1806 = vsel %vm1804, %v101, 0
    %1808 = vmatprep.subr.bf16.mxu0 %v1245
    %1809 = vmatpush1.bf16.msra.mxu0 %v1244
    %1810 = vmatprep.subr.bf16.mxu0 %v1249
    %1811 = vmatpush1.bf16.msra.mxu0 %v1248
    %1812 = vmatprep.subr.bf16.mxu0 %v1253
    %1813 = vmatpush1.bf16.msra.mxu0 %v1252
    %1814 = vmatprep.subr.bf16.mxu0 %v1257
    %1815 = vmatpush1.bf16.msra.mxu0 %v1256
    %1816 = vmatprep.subr.bf16.mxu0 %v1261
    %1817 = vmatpush1.bf16.msra.mxu0 %v1260
    %1818 = vmatprep.subr.bf16.mxu0 %v1265
    %1819 = vmatpush1.bf16.msra.mxu0 %v1264
    %1820 = vmatprep.subr.bf16.mxu0 %v1269
    %1821 = vmatpush1.bf16.msra.mxu0 %v1268
    %1822 = vmatprep.subr.bf16.mxu0 %v1273
    %1823 = vmatpush1.bf16.msra.mxu0 %v1272
    %1824 = vmatprep.subr.bf16.mxu0 %v1277
    %1825 = vmatpush1.bf16.msra.mxu0 %v1276
    %1826 = vmatprep.subr.bf16.mxu0 %v1281
    %1827 = vmatpush1.bf16.msra.mxu0 %v1280
    %1828 = vmatprep.subr.bf16.mxu0 %v1285
    %1829 = vmatpush1.bf16.msra.mxu0 %v1284
    %1830 = vmatprep.subr.bf16.mxu0 %v1289
    %1831 = vmatpush1.bf16.msra.mxu0 %v1288
    %1832 = vmatprep.subr.bf16.mxu0 %v1293
    %1833 = vmatpush1.bf16.msra.mxu0 %v1292
    %1834 = vmatprep.subr.bf16.mxu0 %v1297
    %1835 = vmatpush1.bf16.msra.mxu0 %v1296
    %1836 = vmatprep.subr.bf16.mxu0 %v1301
    %1837 = vmatpush1.bf16.msra.mxu0 %v1300
    %1838 = vmatprep.subr.bf16.mxu0 %v1305
    %1839 = vmatpush1.bf16.msra.mxu0 %v1304
    %1840 = vmatprep.mubr.bf16.mxu0 %v94
    %1841 = vmatmul.mubr.bf16.gmra.mrb[0].mxu0 %v93
    %v1842 = vpop.f32.mrb[0].mxu0
    %v1843 = vadd.f32 %v387, %v1842
    %v1844 = vpop.f32.mrb[0].mxu0
    %v1845 = vadd.f32 %v391, %v1844
    %v1846 = vpop.f32.mrb[0].mxu0
    %v1847 = vpop.f32.mrb[0].mxu0
    %1848 = vdwg.mxu0
    %1849 = vmatprep.subr.bf16.mxu0 %v1309
    %1850 = vmatpush1.bf16.msra.mxu0 %v1308
    %1851 = vmatprep.subr.bf16.mxu0 %v1313
    %1852 = vmatpush1.bf16.msra.mxu0 %v1312
    %1853 = vmatprep.subr.bf16.mxu0 %v1317
    %1854 = vmatpush1.bf16.msra.mxu0 %v1316
    %1855 = vmatprep.subr.bf16.mxu0 %v1321
    %1856 = vmatpush1.bf16.msra.mxu0 %v1320
    %1857 = vmatprep.subr.bf16.mxu0 %v1325
    %1858 = vmatpush1.bf16.msra.mxu0 %v1324
    %1859 = vmatprep.subr.bf16.mxu0 %v1329
    %1860 = vmatpush1.bf16.msra.mxu0 %v1328
    %1861 = vmatprep.subr.bf16.mxu0 %v1333
    %1862 = vmatpush1.bf16.msra.mxu0 %v1332
    %1863 = vmatprep.subr.bf16.mxu0 %v1337
    %1864 = vmatpush1.bf16.msra.mxu0 %v1336
    %1865 = vmatprep.subr.bf16.mxu0 %v1341
    %1866 = vmatpush1.bf16.msra.mxu0 %v1340
    %1867 = vmatprep.subr.bf16.mxu0 %v1345
    %1868 = vmatpush1.bf16.msra.mxu0 %v1344
    %1869 = vmatprep.subr.bf16.mxu0 %v1349
    %1870 = vmatpush1.bf16.msra.mxu0 %v1348
    %1871 = vmatprep.subr.bf16.mxu0 %v1353
    %1872 = vmatpush1.bf16.msra.mxu0 %v1352
    %1873 = vmatprep.subr.bf16.mxu0 %v1357
    %1874 = vmatpush1.bf16.msra.mxu0 %v1356
    %1875 = vmatprep.subr.bf16.mxu0 %v1361
    %1876 = vmatpush1.bf16.msra.mxu0 %v1360
    %1877 = vmatprep.subr.bf16.mxu0 %v1365
    %1878 = vmatpush1.bf16.msra.mxu0 %v1364
    %1879 = vmatprep.subr.bf16.mxu0 %v1369
    %1880 = vmatpush1.bf16.msra.mxu0 %v1368
    %1881 = vmatprep.mubr.bf16.mxu0 %v96
    %1882 = vmatmul.mubr.bf16.gmra.mrb[0].mxu0 %v95
    %v1883 = vpop.f32.mrb[0].mxu0
    %v1884 = vadd.f32 %v1843, %v1883
    %v1885 = vpop.f32.mrb[0].mxu0
    %v1886 = vadd.f32 %v1845, %v1885
    %v1887 = vpop.f32.mrb[0].mxu0
    %v1888 = vpop.f32.mrb[0].mxu0
    %1889 = vdwg.mxu0
    %1890 = vmatprep.subr.bf16.mxu0 %v1373
    %1891 = vmatpush1.bf16.msra.mxu0 %v1372
    %1892 = vmatprep.subr.bf16.mxu0 %v1377
    %1893 = vmatpush1.bf16.msra.mxu0 %v1376
    %1894 = vmatprep.subr.bf16.mxu0 %v1381
    %1895 = vmatpush1.bf16.msra.mxu0 %v1380
    %1896 = vmatprep.subr.bf16.mxu0 %v1385
    %1897 = vmatpush1.bf16.msra.mxu0 %v1384
    %1898 = vmatprep.subr.bf16.mxu0 %v1389
    %1899 = vmatpush1.bf16.msra.mxu0 %v1388
    %1900 = vmatprep.subr.bf16.mxu0 %v1393
    %1901 = vmatpush1.bf16.msra.mxu0 %v1392
    %1902 = vmatprep.subr.bf16.mxu0 %v1397
    %1903 = vmatpush1.bf16.msra.mxu0 %v1396
    %1904 = vmatprep.subr.bf16.mxu0 %v1401
    %1905 = vmatpush1.bf16.msra.mxu0 %v1400
    %1906 = vmatprep.subr.bf16.mxu0 %v1405
    %1907 = vmatpush1.bf16.msra.mxu0 %v1404
    %1908 = vmatprep.subr.bf16.mxu0 %v1409
    %1909 = vmatpush1.bf16.msra.mxu0 %v1408
    %1910 = vmatprep.subr.bf16.mxu0 %v1413
    %1911 = vmatpush1.bf16.msra.mxu0 %v1412
    %1912 = vmatprep.subr.bf16.mxu0 %v1417
    %1913 = vmatpush1.bf16.msra.mxu0 %v1416
    %1914 = vmatprep.subr.bf16.mxu0 %v1421
    %1915 = vmatpush1.bf16.msra.mxu0 %v1420
    %1916 = vmatprep.subr.bf16.mxu0 %v1425
    %1917 = vmatpush1.bf16.msra.mxu0 %v1424
    %1918 = vmatprep.subr.bf16.mxu0 %v1429
    %1919 = vmatpush1.bf16.msra.mxu0 %v1428
    %1920 = vmatprep.subr.bf16.mxu0 %v1433
    %1921 = vmatpush1.bf16.msra.mxu0 %v1432
    %1922 = vmatprep.mubr.bf16.mxu0 %v98
    %1923 = vmatmul.mubr.bf16.gmra.mrb[0].mxu0 %v97
    %v1924 = vpop.f32.mrb[0].mxu0
    %v1925 = vadd.f32 %v1884, %v1924
    %v1926 = vpop.f32.mrb[0].mxu0
    %v1927 = vadd.f32 %v1886, %v1926
    %v1928 = vpop.f32.mrb[0].mxu0
    %v1929 = vpop.f32.mrb[0].mxu0
    %1930 = vdwg.mxu0
    %1931 = vmatprep.subr.bf16.mxu0 %v1437
    %1932 = vmatpush1.bf16.msra.mxu0 %v1436
    %1933 = vmatprep.subr.bf16.mxu0 %v1441
    %1934 = vmatpush1.bf16.msra.mxu0 %v1440
    %1935 = vmatprep.subr.bf16.mxu0 %v1445
    %1936 = vmatpush1.bf16.msra.mxu0 %v1444
    %1937 = vmatprep.subr.bf16.mxu0 %v1449
    %1938 = vmatpush1.bf16.msra.mxu0 %v1448
    %1939 = vmatprep.subr.bf16.mxu0 %v1453
    %1940 = vmatpush1.bf16.msra.mxu0 %v1452
    %1941 = vmatprep.subr.bf16.mxu0 %v1457
    %1942 = vmatpush1.bf16.msra.mxu0 %v1456
    %1943 = vmatprep.subr.bf16.mxu0 %v1461
    %1944 = vmatpush1.bf16.msra.mxu0 %v1460
    %1945 = vmatprep.subr.bf16.mxu0 %v1465
    %1946 = vmatpush1.bf16.msra.mxu0 %v1464
    %1947 = vmatprep.subr.bf16.mxu0 %v1469
    %1948 = vmatpush1.bf16.msra.mxu0 %v1468
    %1949 = vmatprep.subr.bf16.mxu0 %v1473
    %1950 = vmatpush1.bf16.msra.mxu0 %v1472
    %1951 = vmatprep.subr.bf16.mxu0 %v1477
    %1952 = vmatpush1.bf16.msra.mxu0 %v1476
    %1953 = vmatprep.subr.bf16.mxu0 %v1481
    %1954 = vmatpush1.bf16.msra.mxu0 %v1480
    %1955 = vmatprep.subr.bf16.mxu0 %v1485
    %1956 = vmatpush1.bf16.msra.mxu0 %v1484
    %1957 = vmatprep.subr.bf16.mxu0 %v1489
    %1958 = vmatpush1.bf16.msra.mxu0 %v1488
    %1959 = vmatprep.subr.bf16.mxu0 %v1493
    %1960 = vmatpush1.bf16.msra.mxu0 %v1492
    %1961 = vmatprep.subr.bf16.mxu0 %v1497
    %1962 = vmatpush1.bf16.msra.mxu0 %v1496
    %1963 = vmatprep.mubr.bf16.mxu0 %v100
    %1964 = vmatmul.mubr.bf16.gmra.mrb[0].mxu0 %v99
    %v1965 = vpop.f32.mrb[0].mxu0
    %v1966 = vadd.f32 %v1925, %v1965
    %v1967 = vpop.f32.mrb[0].mxu0
    %v1968 = vadd.f32 %v1927, %v1967
    %v1969 = vpop.f32.mrb[0].mxu0
    %v1970 = vpop.f32.mrb[0].mxu0
    %1971 = vdwg.mxu0
    %1972 = vmatprep.subr.bf16.mxu0 %v1501
    %1973 = vmatpush1.bf16.msra.mxu0 %v1500
    %1974 = vmatprep.subr.bf16.mxu0 %v1505
    %1975 = vmatpush1.bf16.msra.mxu0 %v1504
    %1976 = vmatprep.subr.bf16.mxu0 %v1509
    %1977 = vmatpush1.bf16.msra.mxu0 %v1508
    %1978 = vmatprep.subr.bf16.mxu0 %v1513
    %1979 = vmatpush1.bf16.msra.mxu0 %v1512
    %1980 = vmatprep.subr.bf16.mxu0 %v1517
    %1981 = vmatpush1.bf16.msra.mxu0 %v1516
    %1982 = vmatprep.subr.bf16.mxu0 %v1521
    %1983 = vmatpush1.bf16.msra.mxu0 %v1520
    %1984 = vmatprep.subr.bf16.mxu0 0
    %1985 = vmatpush1.bf16.msra.mxu0 0
    %1986 = vmatprep.subr.bf16.mxu0 0
    %1987 = vmatpush1.bf16.msra.mxu0 0
    %1988 = vmatprep.subr.bf16.mxu0 0
    %1989 = vmatpush1.bf16.msra.mxu0 0
    %1990 = vmatprep.subr.bf16.mxu0 0
    %1991 = vmatpush1.bf16.msra.mxu0 0
    %1992 = vmatprep.subr.bf16.mxu0 0
    %1993 = vmatpush1.bf16.msra.mxu0 0
    %1994 = vmatprep.subr.bf16.mxu0 0
    %1995 = vmatpush1.bf16.msra.mxu0 0
    %1996 = vmatprep.subr.bf16.mxu0 0
    %1997 = vmatpush1.bf16.msra.mxu0 0
    %1998 = vmatprep.subr.bf16.mxu0 0
    %1999 = vmatpush1.bf16.msra.mxu0 0
    %2000 = vmatprep.subr.bf16.mxu0 0
    %2001 = vmatpush1.bf16.msra.mxu0 0
    %2002 = vmatprep.subr.bf16.mxu0 0
    %2003 = vmatpush1.bf16.msra.mxu0 0
    %2004 = vmatprep.mubr.bf16.mxu0 0
    %2005 = vmatmul.mubr.bf16.gmra.mrb[0].mxu0 %v1806
    %v2006 = vpop.f32.mrb[0].mxu0
    %v2007 = vadd.f32 %v1966, %v2006
    %v2008 = vpop.f32.mrb[0].mxu0
    %v2009 = vadd.f32 %v1968, %v2008
    %v2010 = vpop.f32.mrb[0].mxu0
    %v2011 = vpop.f32.mrb[0].mxu0
    %2012 = vdwg.mxu0
    %2013 = vmatprep.subr.bf16.mxu0 %v1247
    %2014 = vmatpush1.bf16.msra.mxu0 %v1246
    %2015 = vmatprep.subr.bf16.mxu0 %v1251
    %2016 = vmatpush1.bf16.msra.mxu0 %v1250
    %2017 = vmatprep.subr.bf16.mxu0 %v1255
    %2018 = vmatpush1.bf16.msra.mxu0 %v1254
    %2019 = vmatprep.subr.bf16.mxu0 %v1259
    %2020 = vmatpush1.bf16.msra.mxu0 %v1258
    %2021 = vmatprep.subr.bf16.mxu0 %v1263
    %2022 = vmatpush1.bf16.msra.mxu0 %v1262
    %2023 = vmatprep.subr.bf16.mxu0 %v1267
    %2024 = vmatpush1.bf16.msra.mxu0 %v1266
    %2025 = vmatprep.subr.bf16.mxu0 %v1271
    %2026 = vmatpush1.bf16.msra.mxu0 %v1270
    %2027 = vmatprep.subr.bf16.mxu0 %v1275
    %2028 = vmatpush1.bf16.msra.mxu0 %v1274
    %2029 = vmatprep.subr.bf16.mxu0 %v1279
    %2030 = vmatpush1.bf16.msra.mxu0 %v1278
    %2031 = vmatprep.subr.bf16.mxu0 %v1283
    %2032 = vmatpush1.bf16.msra.mxu0 %v1282
    %2033 = vmatprep.subr.bf16.mxu0 %v1287
    %2034 = vmatpush1.bf16.msra.mxu0 %v1286
    %2035 = vmatprep.subr.bf16.mxu0 %v1291
    %2036 = vmatpush1.bf16.msra.mxu0 %v1290
    %2037 = vmatprep.subr.bf16.mxu0 %v1295
    %2038 = vmatpush1.bf16.msra.mxu0 %v1294
    %2039 = vmatprep.subr.bf16.mxu0 %v1299
    %2040 = vmatpush1.bf16.msra.mxu0 %v1298
    %2041 = vmatprep.subr.bf16.mxu0 %v1303
    %2042 = vmatpush1.bf16.msra.mxu0 %v1302
    %2043 = vmatprep.subr.bf16.mxu0 %v1307
    %2044 = vmatpush1.bf16.msra.mxu0 %v1306
    %2045 = vmatprep.mubr.bf16.mxu0 %v94
    %2046 = vmatmul.mubr.bf16.gmra.mrb[0].mxu0 %v93
    %v2047 = vpop.f32.mrb[0].mxu0
    %v2048 = vadd.f32 %v395, %v2047
    %v2049 = vpop.f32.mrb[0].mxu0
    %v2050 = vadd.f32 %v399, %v2049
    %v2051 = vpop.f32.mrb[0].mxu0
    %v2052 = vpop.f32.mrb[0].mxu0
    %2053 = vdwg.mxu0
    %2054 = vmatprep.subr.bf16.mxu0 %v1311
    %2055 = vmatpush1.bf16.msra.mxu0 %v1310
    %2056 = vmatprep.subr.bf16.mxu0 %v1315
    %2057 = vmatpush1.bf16.msra.mxu0 %v1314
    %2058 = vmatprep.subr.bf16.mxu0 %v1319
    %2059 = vmatpush1.bf16.msra.mxu0 %v1318
    %2060 = vmatprep.subr.bf16.mxu0 %v1323
    %2061 = vmatpush1.bf16.msra.mxu0 %v1322
    %2062 = vmatprep.subr.bf16.mxu0 %v1327
    %2063 = vmatpush1.bf16.msra.mxu0 %v1326
    %2064 = vmatprep.subr.bf16.mxu0 %v1331
    %2065 = vmatpush1.bf16.msra.mxu0 %v1330
    %2066 = vmatprep.subr.bf16.mxu0 %v1335
    %2067 = vmatpush1.bf16.msra.mxu0 %v1334
    %2068 = vmatprep.subr.bf16.mxu0 %v1339
    %2069 = vmatpush1.bf16.msra.mxu0 %v1338
    %2070 = vmatprep.subr.bf16.mxu0 %v1343
    %2071 = vmatpush1.bf16.msra.mxu0 %v1342
    %2072 = vmatprep.subr.bf16.mxu0 %v1347
    %2073 = vmatpush1.bf16.msra.mxu0 %v1346
    %2074 = vmatprep.subr.bf16.mxu0 %v1351
    %2075 = vmatpush1.bf16.msra.mxu0 %v1350
    %2076 = vmatprep.subr.bf16.mxu0 %v1355
    %2077 = vmatpush1.bf16.msra.mxu0 %v1354
    %2078 = vmatprep.subr.bf16.mxu0 %v1359
    %2079 = vmatpush1.bf16.msra.mxu0 %v1358
    %2080 = vmatprep.subr.bf16.mxu0 %v1363
    %2081 = vmatpush1.bf16.msra.mxu0 %v1362
    %2082 = vmatprep.subr.bf16.mxu0 %v1367
    %2083 = vmatpush1.bf16.msra.mxu0 %v1366
    %2084 = vmatprep.subr.bf16.mxu0 %v1371
    %2085 = vmatpush1.bf16.msra.mxu0 %v1370
    %2086 = vmatprep.mubr.bf16.mxu0 %v96
    %2087 = vmatmul.mubr.bf16.gmra.mrb[0].mxu0 %v95
    %v2088 = vpop.f32.mrb[0].mxu0
    %v2089 = vadd.f32 %v2048, %v2088
    %v2090 = vpop.f32.mrb[0].mxu0
    %v2091 = vadd.f32 %v2050, %v2090
    %v2092 = vpop.f32.mrb[0].mxu0
    %v2093 = vpop.f32.mrb[0].mxu0
    %2094 = vdwg.mxu0
    %2095 = vmatprep.subr.bf16.mxu0 %v1375
    %2096 = vmatpush1.bf16.msra.mxu0 %v1374
    %2097 = vmatprep.subr.bf16.mxu0 %v1379
    %2098 = vmatpush1.bf16.msra.mxu0 %v1378
    %2099 = vmatprep.subr.bf16.mxu0 %v1383
    %2100 = vmatpush1.bf16.msra.mxu0 %v1382
    %2101 = vmatprep.subr.bf16.mxu0 %v1387
    %2102 = vmatpush1.bf16.msra.mxu0 %v1386
    %2103 = vmatprep.subr.bf16.mxu0 %v1391
    %2104 = vmatpush1.bf16.msra.mxu0 %v1390
    %2105 = vmatprep.subr.bf16.mxu0 %v1395
    %2106 = vmatpush1.bf16.msra.mxu0 %v1394
    %2107 = vmatprep.subr.bf16.mxu0 %v1399
    %2108 = vmatpush1.bf16.msra.mxu0 %v1398
    %2109 = vmatprep.subr.bf16.mxu0 %v1403
    %2110 = vmatpush1.bf16.msra.mxu0 %v1402
    %2111 = vmatprep.subr.bf16.mxu0 %v1407
    %2112 = vmatpush1.bf16.msra.mxu0 %v1406
    %2113 = vmatprep.subr.bf16.mxu0 %v1411
    %2114 = vmatpush1.bf16.msra.mxu0 %v1410
    %2115 = vmatprep.subr.bf16.mxu0 %v1415
    %2116 = vmatpush1.bf16.msra.mxu0 %v1414
    %2117 = vmatprep.subr.bf16.mxu0 %v1419
    %2118 = vmatpush1.bf16.msra.mxu0 %v1418
    %2119 = vmatprep.subr.bf16.mxu0 %v1423
    %2120 = vmatpush1.bf16.msra.mxu0 %v1422
    %2121 = vmatprep.subr.bf16.mxu0 %v1427
    %2122 = vmatpush1.bf16.msra.mxu0 %v1426
    %2123 = vmatprep.subr.bf16.mxu0 %v1431
    %2124 = vmatpush1.bf16.msra.mxu0 %v1430
    %2125 = vmatprep.subr.bf16.mxu0 %v1435
    %2126 = vmatpush1.bf16.msra.mxu0 %v1434
    %2127 = vmatprep.mubr.bf16.mxu0 %v98
    %2128 = vmatmul.mubr.bf16.gmra.mrb[0].mxu0 %v97
    %v2129 = vpop.f32.mrb[0].mxu0
    %v2130 = vadd.f32 %v2089, %v2129
    %v2131 = vpop.f32.mrb[0].mxu0
    %v2132 = vadd.f32 %v2091, %v2131
    %v2133 = vpop.f32.mrb[0].mxu0
    %v2134 = vpop.f32.mrb[0].mxu0
    %2135 = vdwg.mxu0
    %2136 = vmatprep.subr.bf16.mxu0 %v1439
    %2137 = vmatpush1.bf16.msra.mxu0 %v1438
    %2138 = vmatprep.subr.bf16.mxu0 %v1443
    %2139 = vmatpush1.bf16.msra.mxu0 %v1442
    %2140 = vmatprep.subr.bf16.mxu0 %v1447
    %2141 = vmatpush1.bf16.msra.mxu0 %v1446
    %2142 = vmatprep.subr.bf16.mxu0 %v1451
    %2143 = vmatpush1.bf16.msra.mxu0 %v1450
    %2144 = vmatprep.subr.bf16.mxu0 %v1455
    %2145 = vmatpush1.bf16.msra.mxu0 %v1454
    %2146 = vmatprep.subr.bf16.mxu0 %v1459
    %2147 = vmatpush1.bf16.msra.mxu0 %v1458
    %2148 = vmatprep.subr.bf16.mxu0 %v1463
    %2149 = vmatpush1.bf16.msra.mxu0 %v1462
    %2150 = vmatprep.subr.bf16.mxu0 %v1467
    %2151 = vmatpush1.bf16.msra.mxu0 %v1466
    %2152 = vmatprep.subr.bf16.mxu0 %v1471
    %2153 = vmatpush1.bf16.msra.mxu0 %v1470
    %2154 = vmatprep.subr.bf16.mxu0 %v1475
    %2155 = vmatpush1.bf16.msra.mxu0 %v1474
    %2156 = vmatprep.subr.bf16.mxu0 %v1479
    %2157 = vmatpush1.bf16.msra.mxu0 %v1478
    %2158 = vmatprep.subr.bf16.mxu0 %v1483
    %2159 = vmatpush1.bf16.msra.mxu0 %v1482
    %2160 = vmatprep.subr.bf16.mxu0 %v1487
    %2161 = vmatpush1.bf16.msra.mxu0 %v1486
    %2162 = vmatprep.subr.bf16.mxu0 %v1491
    %2163 = vmatpush1.bf16.msra.mxu0 %v1490
    %2164 = vmatprep.subr.bf16.mxu0 %v1495
    %2165 = vmatpush1.bf16.msra.mxu0 %v1494
    %2166 = vmatprep.subr.bf16.mxu0 %v1499
    %2167 = vmatpush1.bf16.msra.mxu0 %v1498
    %2168 = vmatprep.mubr.bf16.mxu0 %v100
    %2169 = vmatmul.mubr.bf16.gmra.mrb[0].mxu0 %v99
    %v2170 = vpop.f32.mrb[0].mxu0
    %v2171 = vadd.f32 %v2130, %v2170
    %v2172 = vpop.f32.mrb[0].mxu0
    %v2173 = vadd.f32 %v2132, %v2172
    %v2174 = vpop.f32.mrb[0].mxu0
    %v2175 = vpop.f32.mrb[0].mxu0
    %2176 = vdwg.mxu0
    %2177 = vmatprep.subr.bf16.mxu0 %v1503
    %2178 = vmatpush1.bf16.msra.mxu0 %v1502
    %2179 = vmatprep.subr.bf16.mxu0 %v1507
    %2180 = vmatpush1.bf16.msra.mxu0 %v1506
    %2181 = vmatprep.subr.bf16.mxu0 %v1511
    %2182 = vmatpush1.bf16.msra.mxu0 %v1510
    %2183 = vmatprep.subr.bf16.mxu0 %v1515
    %2184 = vmatpush1.bf16.msra.mxu0 %v1514
    %2185 = vmatprep.subr.bf16.mxu0 %v1519
    %2186 = vmatpush1.bf16.msra.mxu0 %v1518
    %2187 = vmatprep.subr.bf16.mxu0 %v1523
    %2188 = vmatpush1.bf16.msra.mxu0 %v1522
    %2189 = vmatprep.subr.bf16.mxu0 0
    %2190 = vmatpush1.bf16.msra.mxu0 0
    %2191 = vmatprep.subr.bf16.mxu0 0
    %2192 = vmatpush1.bf16.msra.mxu0 0
    %2193 = vmatprep.subr.bf16.mxu0 0
    %2194 = vmatpush1.bf16.msra.mxu0 0
    %2195 = vmatprep.subr.bf16.mxu0 0
    %2196 = vmatpush1.bf16.msra.mxu0 0
    %2197 = vmatprep.subr.bf16.mxu0 0
    %2198 = vmatpush1.bf16.msra.mxu0 0
    %2199 = vmatprep.subr.bf16.mxu0 0
    %2200 = vmatpush1.bf16.msra.mxu0 0
    %2201 = vmatprep.subr.bf16.mxu0 0
    %2202 = vmatpush1.bf16.msra.mxu0 0
    %2203 = vmatprep.subr.bf16.mxu0 0
    %2204 = vmatpush1.bf16.msra.mxu0 0
    %2205 = vmatprep.subr.bf16.mxu0 0
    %2206 = vmatpush1.bf16.msra.mxu0 0
    %2207 = vmatprep.subr.bf16.mxu0 0
    %2208 = vmatpush1.bf16.msra.mxu0 0
    %2209 = vmatprep.mubr.bf16.mxu0 0
    %2210 = vmatmul.mubr.bf16.gmra.mrb[0].mxu0 %v1806
    %v2211 = vpop.f32.mrb[0].mxu0
    %v2212 = vadd.f32 %v2171, %v2211
    %v2213 = vpop.f32.mrb[0].mxu0
    %v2214 = vadd.f32 %v2173, %v2213
    %v2215 = vpop.f32.mrb[0].mxu0
    %v2216 = vpop.f32.mrb[0].mxu0
    %2217 = vdwg.mxu0
    %v2218 = vmax.f32 %v2007, 0.0
    %v2219 = vmax.f32 %v2009, 0.0
    %v2220 = vmax.f32 %v2212, 0.0
    %v2221 = vmax.f32 %v2214, 0.0
    %v2222 = vpack.c.bf16 %v2218, %v2218
    %v2223 = vpack.c.bf16 %v2219, %v2219
    %v2224 = vpack.c.bf16 %v2220, %v2220
    %v2225 = vpack.c.bf16 %v2221, %v2221
    %v2226 = vld [vmem:[#allocation8] sm:$0xf]
    %v2227 = vld [vmem:[#allocation8 + $0x4] sm:$0xf]
    %v2228 = vld [vmem:[#allocation8 + $0x8] sm:$0xf]
    %v2229 = vld [vmem:[#allocation8 + $0xc] sm:$0xf]
    %v2230 = vld [vmem:[#allocation8 + $0x10] sm:$0xf]
    %v2231 = vld [vmem:[#allocation8 + $0x14] sm:$0xf]
    %v2232 = vld [vmem:[#allocation8 + $0x18] sm:$0xf]
    %v2233 = vld [vmem:[#allocation8 + $0x1c] sm:$0xf]
    %v2234 = vld [vmem:[#allocation8 + $0x20] sm:$0xf]
    %v2235 = vld [vmem:[#allocation8 + $0x24] sm:$0xf]
    %v2236 = vld [vmem:[#allocation8 + $0x28] sm:$0xf]
    %v2237 = vld [vmem:[#allocation8 + $0x2c] sm:$0xf]
    %v2238 = vld [vmem:[#allocation8 + $0x30] sm:$0xf]
    %v2239 = vld [vmem:[#allocation8 + $0x34] sm:$0xf]
    %v2240 = vld [vmem:[#allocation8 + $0x38] sm:$0xf]
    %v2241 = vld [vmem:[#allocation8 + $0x3c] sm:$0xf]
    %v2242 = vld [vmem:[#allocation8 + $0x40] sm:$0xf]
    %v2243 = vld [vmem:[#allocation8 + $0x44] sm:$0xf]
    %v2244 = vld [vmem:[#allocation8 + $0x48] sm:$0xf]
    %v2245 = vld [vmem:[#allocation8 + $0x4c] sm:$0xf]
    %v2246 = vld [vmem:[#allocation8 + $0x50] sm:$0xf]
    %v2247 = vld [vmem:[#allocation8 + $0x54] sm:$0xf]
    %v2248 = vld [vmem:[#allocation8 + $0x58] sm:$0xf]
    %v2249 = vld [vmem:[#allocation8 + $0x5c] sm:$0xf]
    %v2250 = vld [vmem:[#allocation8 + $0x60] sm:$0xf]
    %v2251 = vld [vmem:[#allocation8 + $0x64] sm:$0xf]
    %v2252 = vld [vmem:[#allocation8 + $0x68] sm:$0xf]
    %v2253 = vld [vmem:[#allocation8 + $0x6c] sm:$0xf]
    %v2254 = vld [vmem:[#allocation8 + $0x70] sm:$0xf]
    %v2255 = vld [vmem:[#allocation8 + $0x74] sm:$0xf]
    %v2256 = vld [vmem:[#allocation8 + $0x78] sm:$0xf]
    %v2257 = vld [vmem:[#allocation8 + $0x7c] sm:$0xf]
    %v2258 = vld [vmem:[#allocation8 + $0x80] sm:$0xf]
    %v2259 = vld [vmem:[#allocation8 + $0x84] sm:$0xf]
    %v2260 = vld [vmem:[#allocation8 + $0x88] sm:$0xf]
    %v2261 = vld [vmem:[#allocation8 + $0x8c] sm:$0xf]
    %v2262 = vld [vmem:[#allocation8 + $0x90] sm:$0xf]
    %v2263 = vld [vmem:[#allocation8 + $0x94] sm:$0xf]
    %v2264 = vld [vmem:[#allocation8 + $0x98] sm:$0xf]
    %v2265 = vld [vmem:[#allocation8 + $0x9c] sm:$0xf]
    %v2266 = vld [vmem:[#allocation8 + $0xa0] sm:$0xf]
    %v2267 = vld [vmem:[#allocation8 + $0xa4] sm:$0xf]
    %v2268 = vld [vmem:[#allocation8 + $0xa8] sm:$0xf]
    %v2269 = vld [vmem:[#allocation8 + $0xac] sm:$0xf]
    %v2270 = vld [vmem:[#allocation8 + $0xb0] sm:$0xf]
    %v2271 = vld [vmem:[#allocation8 + $0xb4] sm:$0xf]
    %v2272 = vld [vmem:[#allocation8 + $0xb8] sm:$0xf]
    %v2273 = vld [vmem:[#allocation8 + $0xbc] sm:$0xf]
    %v2274 = vld [vmem:[#allocation8 + $0xc0] sm:$0xf]
    %v2275 = vld [vmem:[#allocation8 + $0xc4] sm:$0xf]
    %v2276 = vld [vmem:[#allocation8 + $0xc8] sm:$0xf]
    %v2277 = vld [vmem:[#allocation8 + $0xcc] sm:$0xf]
    %v2278 = vld [vmem:[#allocation8 + $0xd0] sm:$0xf]
    %v2279 = vld [vmem:[#allocation8 + $0xd4] sm:$0xf]
    %v2280 = vld [vmem:[#allocation8 + $0xd8] sm:$0xf]
    %v2281 = vld [vmem:[#allocation8 + $0xdc] sm:$0xf]
    %v2282 = vld [vmem:[#allocation8 + $0xe0] sm:$0xf]
    %v2283 = vld [vmem:[#allocation8 + $0xe4] sm:$0xf]
    %v2284 = vld [vmem:[#allocation8 + $0xe8] sm:$0xf]
    %v2285 = vld [vmem:[#allocation8 + $0xec] sm:$0xf]
    %v2286 = vld [vmem:[#allocation8 + $0xf0] sm:$0xf]
    %v2287 = vld [vmem:[#allocation8 + $0xf4] sm:$0xf]
    %v2288 = vld [vmem:[#allocation8 + $0xf8] sm:$0xf]
    %v2289 = vld [vmem:[#allocation8 + $0xfc] sm:$0xf]
    %v2290 = vld [vmem:[#allocation10] sm:$0x1]
    %v2292 = vlaneseq
    %v2293 = vshrl.u32 %v2292, 7
    %v2294 = vsub.s32 0, %v2293
    %v2295 = vrot.slane %v2290, %v2294
    %v2361 = vunpack.c.l.b16 %v2226
    %v2362 = vunpack.c.l.b16 %v2227
    %v2363 = vunpack.c.l.b16 %v2228
    %v2364 = vunpack.c.l.b16 %v2229
    %v2365 = vunpack.c.l.b16 %v2230
    %v2366 = vunpack.c.l.b16 %v2231
    %v2367 = vunpack.c.l.b16 %v2232
    %v2368 = vunpack.c.l.b16 %v2233
    %v2369 = vunpack.c.l.b16 %v2234
    %v2370 = vunpack.c.l.b16 %v2235
    %v2371 = vunpack.c.l.b16 %v2236
    %v2372 = vunpack.c.l.b16 %v2237
    %v2373 = vunpack.c.l.b16 %v2238
    %v2374 = vunpack.c.l.b16 %v2239
    %v2375 = vunpack.c.l.b16 %v2240
    %v2376 = vunpack.c.l.b16 %v2241
    %v2377 = vunpack.c.l.b16 %v2242
    %v2378 = vunpack.c.l.b16 %v2243
    %v2379 = vunpack.c.l.b16 %v2244
    %v2380 = vunpack.c.l.b16 %v2245
    %v2381 = vunpack.c.l.b16 %v2246
    %v2382 = vunpack.c.l.b16 %v2247
    %v2383 = vunpack.c.l.b16 %v2248
    %v2384 = vunpack.c.l.b16 %v2249
    %v2385 = vunpack.c.l.b16 %v2250
    %v2386 = vunpack.c.l.b16 %v2251
    %v2387 = vunpack.c.l.b16 %v2252
    %v2388 = vunpack.c.l.b16 %v2253
    %v2389 = vunpack.c.l.b16 %v2254
    %v2390 = vunpack.c.l.b16 %v2255
    %v2391 = vunpack.c.l.b16 %v2256
    %v2392 = vunpack.c.l.b16 %v2257
    %v2393 = vunpack.c.l.b16 %v2258
    %v2394 = vunpack.c.l.b16 %v2259
    %v2395 = vunpack.c.l.b16 %v2260
    %v2396 = vunpack.c.l.b16 %v2261
    %v2397 = vunpack.c.l.b16 %v2262
    %v2398 = vunpack.c.l.b16 %v2263
    %v2399 = vunpack.c.l.b16 %v2264
    %v2400 = vunpack.c.l.b16 %v2265
    %v2401 = vunpack.c.l.b16 %v2266
    %v2402 = vunpack.c.l.b16 %v2267
    %v2403 = vunpack.c.l.b16 %v2268
    %v2404 = vunpack.c.l.b16 %v2269
    %v2405 = vunpack.c.l.b16 %v2270
    %v2406 = vunpack.c.l.b16 %v2271
    %v2407 = vunpack.c.l.b16 %v2272
    %v2408 = vunpack.c.l.b16 %v2273
    %v2409 = vunpack.c.l.b16 %v2274
    %v2410 = vunpack.c.l.b16 %v2275
    %v2411 = vunpack.c.l.b16 %v2276
    %v2412 = vunpack.c.l.b16 %v2277
    %v2413 = vunpack.c.l.b16 %v2278
    %v2414 = vunpack.c.l.b16 %v2279
    %v2415 = vunpack.c.l.b16 %v2280
    %v2416 = vunpack.c.l.b16 %v2281
    %v2417 = vunpack.c.l.b16 %v2282
    %v2418 = vunpack.c.l.b16 %v2283
    %v2419 = vunpack.c.l.b16 %v2284
    %v2420 = vunpack.c.l.b16 %v2285
    %v2421 = vunpack.c.l.b16 %v2286
    %v2422 = vunpack.c.l.b16 %v2287
    %v2423 = vunpack.c.l.b16 %v2288
    %v2424 = vunpack.c.l.b16 %v2289
    %v2425 = vpack.c.b16 %v2362, %v2361
    %v2426 = vpack.c.b16 %v2364, %v2363
    %v2427 = vpack.c.b16 %v2366, %v2365
    %v2428 = vpack.c.b16 %v2368, %v2367
    %v2429 = vpack.c.b16 %v2370, %v2369
    %v2430 = vpack.c.b16 %v2372, %v2371
    %v2431 = vpack.c.b16 %v2374, %v2373
    %v2432 = vpack.c.b16 %v2376, %v2375
    %v2433 = vpack.c.b16 %v2378, %v2377
    %v2434 = vpack.c.b16 %v2380, %v2379
    %v2435 = vpack.c.b16 %v2382, %v2381
    %v2436 = vpack.c.b16 %v2384, %v2383
    %v2437 = vpack.c.b16 %v2386, %v2385
    %v2438 = vpack.c.b16 %v2388, %v2387
    %v2439 = vpack.c.b16 %v2390, %v2389
    %v2440 = vpack.c.b16 %v2392, %v2391
    %v2441 = vpack.c.b16 %v2394, %v2393
    %v2442 = vpack.c.b16 %v2396, %v2395
    %v2443 = vpack.c.b16 %v2398, %v2397
    %v2444 = vpack.c.b16 %v2400, %v2399
    %v2445 = vpack.c.b16 %v2402, %v2401
    %v2446 = vpack.c.b16 %v2404, %v2403
    %v2447 = vpack.c.b16 %v2406, %v2405
    %v2448 = vpack.c.b16 %v2408, %v2407
    %v2449 = vpack.c.b16 %v2410, %v2409
    %v2450 = vpack.c.b16 %v2412, %v2411
    %v2451 = vpack.c.b16 %v2414, %v2413
    %v2452 = vpack.c.b16 %v2416, %v2415
    %v2453 = vpack.c.b16 %v2418, %v2417
    %v2454 = vpack.c.b16 %v2420, %v2419
    %v2455 = vpack.c.b16 %v2422, %v2421
    %v2456 = vpack.c.b16 %v2424, %v2423
    %2489 = vmatprep.subr.bf16.mxu0 0
    %2490 = vmatpush1.bf16.msra.mxu0 %v2425
    %2491 = vmatprep.subr.bf16.mxu0 0
    %2492 = vmatpush1.bf16.msra.mxu0 %v2426
    %2493 = vmatprep.subr.bf16.mxu0 0
    %2494 = vmatpush1.bf16.msra.mxu0 %v2427
    %2495 = vmatprep.subr.bf16.mxu0 0
    %2496 = vmatpush1.bf16.msra.mxu0 %v2428
    %2497 = vmatprep.subr.bf16.mxu0 0
    %2498 = vmatpush1.bf16.msra.mxu0 %v2429
    %2499 = vmatprep.subr.bf16.mxu0 0
    %2500 = vmatpush1.bf16.msra.mxu0 %v2430
    %2501 = vmatprep.subr.bf16.mxu0 0
    %2502 = vmatpush1.bf16.msra.mxu0 %v2431
    %2503 = vmatprep.subr.bf16.mxu0 0
    %2504 = vmatpush1.bf16.msra.mxu0 %v2432
    %2505 = vmatprep.subr.bf16.mxu0 0
    %2506 = vmatpush1.bf16.msra.mxu0 %v2433
    %2507 = vmatprep.subr.bf16.mxu0 0
    %2508 = vmatpush1.bf16.msra.mxu0 %v2434
    %2509 = vmatprep.subr.bf16.mxu0 0
    %2510 = vmatpush1.bf16.msra.mxu0 %v2435
    %2511 = vmatprep.subr.bf16.mxu0 0
    %2512 = vmatpush1.bf16.msra.mxu0 %v2436
    %2513 = vmatprep.subr.bf16.mxu0 0
    %2514 = vmatpush1.bf16.msra.mxu0 %v2437
    %2515 = vmatprep.subr.bf16.mxu0 0
    %2516 = vmatpush1.bf16.msra.mxu0 %v2438
    %2517 = vmatprep.subr.bf16.mxu0 0
    %2518 = vmatpush1.bf16.msra.mxu0 %v2439
    %2519 = vmatprep.subr.bf16.mxu0 0
    %2520 = vmatpush1.bf16.msra.mxu0 %v2440
    %2521 = vmatprep.mubr.bf16.mxu0 %v2223
    %2522 = vmatmul.mubr.bf16.gmra.mrb[0].mxu0 %v2222
    %v2523 = vpop.f32.mrb[0].mxu0
    %v2524 = vadd.f32 %v2295, %v2523
    %v2525 = vpop.f32.mrb[0].mxu0
    %v2526 = vpop.f32.mrb[0].mxu0
    %v2527 = vpop.f32.mrb[0].mxu0
    %2528 = vdwg.mxu0
    %2529 = vmatprep.subr.bf16.mxu0 0
    %2530 = vmatpush1.bf16.msra.mxu0 %v2441
    %2531 = vmatprep.subr.bf16.mxu0 0
    %2532 = vmatpush1.bf16.msra.mxu0 %v2442
    %2533 = vmatprep.subr.bf16.mxu0 0
    %2534 = vmatpush1.bf16.msra.mxu0 %v2443
    %2535 = vmatprep.subr.bf16.mxu0 0
    %2536 = vmatpush1.bf16.msra.mxu0 %v2444
    %2537 = vmatprep.subr.bf16.mxu0 0
    %2538 = vmatpush1.bf16.msra.mxu0 %v2445
    %2539 = vmatprep.subr.bf16.mxu0 0
    %2540 = vmatpush1.bf16.msra.mxu0 %v2446
    %2541 = vmatprep.subr.bf16.mxu0 0
    %2542 = vmatpush1.bf16.msra.mxu0 %v2447
    %2543 = vmatprep.subr.bf16.mxu0 0
    %2544 = vmatpush1.bf16.msra.mxu0 %v2448
    %2545 = vmatprep.subr.bf16.mxu0 0
    %2546 = vmatpush1.bf16.msra.mxu0 %v2449
    %2547 = vmatprep.subr.bf16.mxu0 0
    %2548 = vmatpush1.bf16.msra.mxu0 %v2450
    %2549 = vmatprep.subr.bf16.mxu0 0
    %2550 = vmatpush1.bf16.msra.mxu0 %v2451
    %2551 = vmatprep.subr.bf16.mxu0 0
    %2552 = vmatpush1.bf16.msra.mxu0 %v2452
    %2553 = vmatprep.subr.bf16.mxu0 0
    %2554 = vmatpush1.bf16.msra.mxu0 %v2453
    %2555 = vmatprep.subr.bf16.mxu0 0
    %2556 = vmatpush1.bf16.msra.mxu0 %v2454
    %2557 = vmatprep.subr.bf16.mxu0 0
    %2558 = vmatpush1.bf16.msra.mxu0 %v2455
    %2559 = vmatprep.subr.bf16.mxu0 0
    %2560 = vmatpush1.bf16.msra.mxu0 %v2456
    %2561 = vmatprep.mubr.bf16.mxu0 %v2225
    %2562 = vmatmul.mubr.bf16.gmra.mrb[0].mxu0 %v2224
    %v2563 = vpop.f32.mrb[0].mxu0
    %v2564 = vadd.f32 %v2524, %v2563
    %v2565 = vpop.f32.mrb[0].mxu0
    %v2566 = vpop.f32.mrb[0].mxu0
    %v2567 = vpop.f32.mrb[0].mxu0
    %2568 = vdwg.mxu0
    %v2569 = vpack.c.bf16 %v2564, %v2564
    %2570 = vst [vmem:[#allocation11] sm:$0xf] %v2569
    // Predicated region
    $region42: #{tpu_custom_call.1} parent=1 // pred_check
      _
    $region43: #{tpu_custom_call.1} parent=1 // pred_check_branch
      %2572 = sbr.rel (0) target = $region45
    $region44: #{tpu_custom_call.1} parent=1 // pred_region
      %s2574 = ssub.s32 64, 64
      %2575 = vsyncadd [#allocation4], %s2574
      %s2577 = sshll.u32 [#allocation11], 4
      %s2578 = int_to_ptr.vmem [resolvable:$true] %s2577
      %2580 = dma.vmem_to_hbm [thread:$0]  %s2578, 64, %s5, [#allocation4]
    $region45: #{tpu_custom_call.1} parent=1 // pred_fallthru
      _
    // Predicated region
    $region46: #{tpu_custom_call.1} parent=1 // pred_check
      _
    $region47: #{tpu_custom_call.1} parent=1 // pred_check_branch
      %2582 = sbr.rel (0) target = $region49
    $region48: #{tpu_custom_call.1} parent=1 // pred_region
      %2583 = dma.done [#allocation4], 64
    $region49: #{tpu_custom_call.1} parent=1 // pred_fallthru
      _
    %2584 = vsyncpa [#allocation3], 1
    %2585 = vsyncpa [#allocation6], 1
    %2586 = vsyncpa [#allocation9], 1
    %2587 = vsyncpa [#allocation4], 1

</llo_original>
